<compile_context>
chip_gen: v7x
topology: tpu7x:2x2x1
jax: 0.10.0
libtpu: 0.0.40
codegen_flags: <defaults>
</compile_context>

<pallas_src>
import math
import numpy as np
import jax
import jax.numpy as jnp
from jax.experimental import pallas as pl
from jax.experimental.pallas import tpu as pltpu

# --- module constants (from utils.py) ---
GRID_LS = 32
NGR = NGZ = 16
PHYSICS_LS = 64
NIN = 19 + 38 + 38          # USE_CURRENTS + USE_PROFILES + USE_MAGNETIC = 95
NLCFS = 129

# --- packing constants ---
_KP = 128                   # lane width of the pack-A contraction dim
_XW = 2 * _KP               # input slab lanes: [x(0:95)|0|r,z(128:160)|0]
_NOUT = 896                 # lane-dense output: [y1(256)|y2(256)|y3(258)|pad]
_NLAYERS_A = 7              # fused layers 0..6 (pack A)
_NLAYERS = 8                # total fused layers (7 = final big matmul)

# (N_compute) of each pack-A fused layer as seen by the kernel (K is always
# the full 128 sublanes of the pack; unused rows are zero).
_LAYER_N = (
    128,   # 0: InputNet L0 (norm folded), real N=64
    128,   # 1: InputNet L1,               real N=64
    128,   # 2: InputNet L2,               real N=64
    128,   # 3: grid_r L0 | grid_z L0,     real N=64 (block-diagonal)
    128,   # 4: grid_r L1 | grid_z L1,     real N=32 (block-diagonal)
    128,   # 5: phys2grid | LCFS L0,       real N=64 (shared input ph)
    256,   # 6: flux1 L0 | flux2 L0 | LCFS L1, real N=160
)
# layer 7: flux1 L1 | flux2 L1 | LCFS L2, K=256, N=896 (real 770)


# ----------------------------------------------------------------------------
# Pallas kernel: the whole LiuqeNet forward, 8 fused bf16 MXU matmuls.
# ----------------------------------------------------------------------------
def liuqe_kernel(x_ref, wa_ref, w7_ref, b_ref, bh_ref, out_ref):
    nrows = x_ref.shape[0]
    halves = 2 if (nrows >= 16 and nrows % 16 == 0) else 1
    hr = nrows // halves

    # Constant lane mask selecting lanes [32, 64): lets the h3 activation pass
    # through the gr1*gr2 product untouched (see layer 5/6 wiring below).
    lane = jax.lax.broadcasted_iota(jnp.int32, (1, _KP), 1)
    h3_mask = ((lane >= GRID_LS) & (lane < 2 * GRID_LS)).astype(jnp.float32)

    def actf(y, i, n):
        # ActF(y) = y * sigmoid(beta*y), sigmoid via tanh (single EUP push).
        # bh_ref stores 0.5*beta per lane.
        bh = bh_ref[i:i + 1, 0:n]
        return y * (0.5 * jnp.tanh(bh * y) + 0.5)

    def layer_a(h, i):
        n = _LAYER_N[i]
        y = jnp.dot(h.astype(jnp.bfloat16), wa_ref[i, :, 0:n],
                    preferred_element_type=jnp.float32)
        return actf(y + b_ref[i:i + 1, 0:n], i, n)

    def chain(rows):
        xin = x_ref[rows, :]                     # (hr, 256) f32
        # ---- InputNet (normalization folded into layer 0) ----
        ph = layer_a(xin[:, 0:_KP], 0)
        ph = layer_a(ph, 1)
        ph = layer_a(ph, 2)                      # lanes 0:64 = ph
        # ---- GridNet ----
        g = layer_a(xin[:, _KP:_XW], 3)          # [hr | hz]       lanes 0:64
        g1 = layer_a(g, 4)                       # gr1 = [rr | zz] lanes 0:32
        pg = layer_a(ph, 5)                      # [gr2 (0:32) | h3a (32:64)]
        # in6 lanes 0:32 = gr1*gr2, 32:64 = h3a (mask), 64:128 = 0
        in6 = pg * (g1 + h3_mask)
        # ---- FluxHead1 | FluxHead2 | LCFSHead (fused tails) ----
        h_all = layer_a(in6, 6)                  # [h1(64)|h2(64)|h3(32)|0]
        y = jnp.dot(h_all.astype(jnp.bfloat16), w7_ref[...],
                    preferred_element_type=jnp.float32)
        out_ref[rows, :] = actf(y + b_ref[7:8, :], 7, _NOUT)

    # Two independent row halves in one basic block -> MXU / VPU+EUP overlap.
    for h in range(halves):
        chain(pl.ds(h * hr, hr))


# ----------------------------------------------------------------------------
# Parameter construction (mimics torch Linear default init).
# ----------------------------------------------------------------------------
def make_linear(key, fan_in, fan_out):
    kw, kb = jax.random.split(key)
    bound = 1.0 / math.sqrt(fan_in)
    w = jax.random.uniform(kw, (fan_in, fan_out), jnp.float32, -bound, bound)
    b = jax.random.uniform(kb, (fan_out,), jnp.float32, -bound, bound)
    return w, b


def make_params(seed=42):
    key = jax.random.PRNGKey(seed)
    layer_dims = [
        (NIN, 64), (64, 64), (64, PHYSICS_LS),          # InputNet      0..2
        (NGR, 32), (32, GRID_LS // 2),                  # grid_r        3..4
        (NGZ, 32), (32, GRID_LS // 2),                  # grid_z        5..6
        (PHYSICS_LS, GRID_LS),                          # phys2grid     7
        (GRID_LS, 64), (64, NGR * NGZ),                 # FluxHead1     8..9
        (GRID_LS, 64), (64, NGR * NGZ),                 # FluxHead2     10..11
        (PHYSICS_LS, 32), (32, 32), (32, NLCFS * 2),    # LCFSHead      12..14
    ]
    keys = jax.random.split(key, len(layer_dims))
    wb = []
    for k, (fi, fo) in zip(keys, layer_dims):
        w, b = make_linear(k, fi, fo)
        wb.extend([w, b])
    # torch init is beta=1.0; distinct values exercise the per-lane beta fusion.
    betas = 1.0 + 0.05 * jnp.arange(15, dtype=jnp.float32)
    mean = jnp.linspace(-0.5, 0.5, NIN, dtype=jnp.float32)
    std = jnp.linspace(0.5, 1.5, NIN, dtype=jnp.float32)
    return betas, jnp.stack([mean, std], axis=0), wb


def pack_params(betas, x_mean_std, wb):
    """Fuse + pad the 15 Linear layers into 8 packed layers (bf16 weights)."""
    w = lambda i: np.asarray(wb[2 * i], np.float64)
    b = lambda i: np.asarray(wb[2 * i + 1], np.float64)
    bt = np.asarray(betas, np.float64)

    wa = np.zeros((_NLAYERS_A, _KP, 2 * _KP), np.float64)   # layers 0..6
    w7 = np.zeros((2 * _KP, _NOUT), np.float64)             # layer 7
    bp = np.zeros((_NLAYERS, _NOUT), np.float64)             # biases
    hb = np.full((_NLAYERS, _NOUT), 0.5, np.float64)         # 0.5*beta (pad beta=1)

    def put_a(layer, r0, c0, idx, wm=None, bv=None):
        wm = w(idx) if wm is None else wm
        bv = b(idx) if bv is None else bv
        ki, ni = wm.shape
        wa[layer, r0:r0 + ki, c0:c0 + ni] = wm
        bp[layer, c0:c0 + ni] = bv
        hb[layer, c0:c0 + ni] = 0.5 * bt[idx]

    # Layer 0: InputNet L0 with the input normalization folded in:
    #   ((x-mean)/std) @ W0 + b0 == x @ (diag(1/std)@W0) + (b0 - (mean/std)@W0)
    inv_std = 1.0 / np.asarray(x_mean_std[1], np.float64)
    mean = np.asarray(x_mean_std[0], np.float64)
    w0 = w(0) * inv_std[:, None]
    b0 = b(0) - (mean * inv_std) @ w(0)
    put_a(0, 0, 0, 0, wm=w0, bv=b0)                 # InputNet L0 (folded)
    put_a(1, 0, 0, 1)                               # InputNet L1
    put_a(2, 0, 0, 2)                               # InputNet L2
    put_a(3, 0, 0, 3);   put_a(3, 16, 32, 5)        # grid_r L0 | grid_z L0
    put_a(4, 0, 0, 4);   put_a(4, 32, 16, 6)        # grid_r L1 | grid_z L1
    put_a(5, 0, 0, 7);   put_a(5, 0, 32, 12)        # phys2grid | LCFS L0
    put_a(6, 0, 0, 8);   put_a(6, 0, 64, 10);  put_a(6, 32, 128, 13)
    #                     flux1 L0 | flux2 L0 | LCFS L1

    def put_7(r0, c0, idx):
        wm, bv = w(idx), b(idx)
        ki, ni = wm.shape
        w7[r0:r0 + ki, c0:c0 + ni] = wm
        bp[7, c0:c0 + ni] = bv
        hb[7, c0:c0 + ni] = 0.5 * bt[idx]

    put_7(0, 0, 9)                                  # flux1 L1 -> y1 (0:256)
    put_7(64, 256, 11)                              # flux2 L1 -> y2 (256:512)
    put_7(128, 512, 14)                             # LCFS  L2 -> y3 (512:770)

    # Pad-lane invariant the whole scheme relies on: pad bias == 0 and
    # pad half-beta == 0.5 (beta==1) so every padded lane is exactly 0.
    real_cols = {0: 64, 1: 64, 2: 64, 3: 64, 4: 32, 5: 64, 6: 160,
                 7: 2 * NGR * NGZ + 2 * NLCFS}
    for layer, nc in real_cols.items():
        assert np.all(bp[layer, nc:] == 0.0), "pad bias must stay 0"
        assert np.all(hb[layer, nc:] == 0.5), "pad beta must stay 1"

    return (jnp.asarray(wa, jnp.bfloat16), jnp.asarray(w7, jnp.bfloat16),
            jnp.asarray(bp, jnp.float32), jnp.asarray(hb, jnp.float32))


# ----------------------------------------------------------------------------
# Wrapper: batch-tiled pallas_call; packs stay VMEM-resident across tiles.
# ----------------------------------------------------------------------------
def _round_up(n, m):
    return -(-n // m) * m


def liuqe_net(x, r, z, packed, *, batch_tile=1024):
    """Fused LiuqeNet forward; returns (y1, y2, y3) like the PyTorch module."""
    wa, w7, bpack, bhpack = packed
    B = x.shape[0]
    tb = min(batch_tile, _round_up(B, 8))
    bpad = _round_up(B, tb)

    # One input slab: x (95 lanes) at 0:95, [r|z] (32 lanes) at 128:160.
    xp = jnp.zeros((bpad, _XW), jnp.float32)
    xp = xp.at[:B, :NIN].set(x)
    xp = xp.at[:B, _KP:_KP + NGR].set(r)
    xp = xp.at[:B, _KP + NGR:_KP + NGR + NGZ].set(z)

    out = pl.pallas_call(
        liuqe_kernel,
        out_shape=jax.ShapeDtypeStruct((bpad, _NOUT), jnp.float32),
        grid=(bpad // tb,),
        in_specs=[
            pl.BlockSpec((tb, _XW), lambda i: (i, 0)),                 # [x | r z]
            pl.BlockSpec((_NLAYERS_A, _KP, _XW), lambda i: (0, 0, 0)),  # pack A (bf16)
            pl.BlockSpec((_XW, _NOUT), lambda i: (0, 0)),               # layer-7 W (bf16)
            pl.BlockSpec((_NLAYERS, _NOUT), lambda i: (0, 0)),          # bias pack
            pl.BlockSpec((_NLAYERS, _NOUT), lambda i: (0, 0)),          # 0.5*beta pack
        ],
        out_specs=pl.BlockSpec((tb, _NOUT), lambda i: (i, 0)),          # [y1|y2|y3]
        compiler_params=pltpu.CompilerParams(
            dimension_semantics=("parallel",),        # v7x: shard tiles across TCs
            vmem_limit_bytes=48 * 1024 * 1024,        # room for TB=1024 everywhere
        ),
    )(xp, wa, w7, bpack, bhpack)

    ngrz = NGR * NGZ
    y1 = out[:B, 0:ngrz].reshape(B, 1, NGR, NGZ)       # PyTorch .view(-1,1,NGR,NGZ)
    y2 = out[:B, ngrz:2 * ngrz].reshape(B, 1, NGR, NGZ)
    y3 = out[:B, 2 * ngrz:2 * ngrz + NLCFS * 2]
    return y1, y2, y3


# ----------------------------------------------------------------------------
# Pure-JAX f32 reference (unfused, unpacked) for numerical sanity check.
# ----------------------------------------------------------------------------
def liuqe_ref(x, r, z, betas, x_mean_std, wb):
    def lin(h, i):
        return h @ wb[2 * i] + wb[2 * i + 1]

    def act(h, i):
        return h * jax.nn.sigmoid(betas[i] * h)

    xn = (x - x_mean_std[0]) / x_mean_std[1]
    ph = act(lin(xn, 0), 0)
    ph = act(lin(ph, 1), 1)
    ph = act(lin(ph, 2), 2)
    rr = act(lin(r, 3), 3)
    rr = act(lin(rr, 4), 4)
    zz = act(lin(z, 5), 5)
    zz = act(lin(zz, 6), 6)
    gr = jnp.concatenate([rr, zz], axis=1) * act(lin(ph, 7), 7)
    y1 = act(lin(act(lin(gr, 8), 8), 9), 9).reshape(-1, 1, NGR, NGZ)
    y2 = act(lin(act(lin(gr, 10), 10), 11), 11).reshape(-1, 1, NGR, NGZ)
    h3 = act(lin(ph, 12), 12)
    h3 = act(lin(h3, 13), 13)
    y3 = act(lin(h3, 14), 14)
    return y1, y2, y3


if __name__ == "__main__":
    B = 8
    betas, x_mean_std, wb = make_params(seed=42)
    packed = pack_params(betas, x_mean_std, wb)

    key = jax.random.PRNGKey(0)
    kx, kr, kz = jax.random.split(key, 3)
    x = jax.random.normal(kx, (B, NIN), jnp.float32)
    r = jax.random.normal(kr, (B, NGR), jnp.float32)
    z = jax.random.normal(kz, (B, NGZ), jnp.float32)

    y1, y2, y3 = liuqe_net(x, r, z, packed)
    jax.block_until_ready((y1, y2, y3))

    # Sanity check vs the f32 reference.  The kernel uses bf16 MXU operands,
    # so compare with a max-norm relative tolerance instead of the f32-tight
    # 1e-4 allclose (wiring bugs would still show up as O(100%) errors).
    r1, r2, r3 = liuqe_ref(x, r, z, betas, x_mean_std, wb)
    assert y1.shape == (B, 1, NGR, NGZ) and y2.shape == (B, 1, NGR, NGZ)
    assert y3.shape == (B, NLCFS * 2)
    for name, got, ref in (("y1", y1, r1), ("y2", y2, r2), ("y3", y3, r3)):
        scale = float(jnp.max(jnp.abs(ref)))
        err = float(jnp.max(jnp.abs(got - ref)))
        assert err <= 3e-2 * scale + 1e-6, f"{name}: err={err:.3e} scale={scale:.3e}"

    print("KERNEL_OK")
</pallas_src>

<mosaic_0001>
module attributes {stable_mosaic.version = 11 : i64} {
  func.func @liuqe_kernel(%arg0: i32, %arg1: memref<8x256xf32, #tpu.memory_space<vmem>>, %arg2: memref<7x128x256xbf16, #tpu.memory_space<vmem>>, %arg3: memref<256x896xbf16, #tpu.memory_space<vmem>>, %arg4: memref<8x896xf32, #tpu.memory_space<vmem>>, %arg5: memref<8x896xf32, #tpu.memory_space<vmem>>, %arg6: memref<8x896xf32, #tpu.memory_space<vmem>>) attributes {dimension_semantics = [#tpu.dimension_semantics<parallel>], iteration_bounds = array<i64: 1>, scalar_prefetch = 0 : i64, scratch_operands = 0 : i64, tpu.core_type = #tpu.core_type<tc>, window_params = [{transform_indices = @transform_0, window_bounds = array<i64: 8, 256>}, {pipeline_mode = #tpu.pipeline_mode<synchronous>, transform_indices = @transform_1, window_bounds = array<i64: 7, 128, 256>}, {pipeline_mode = #tpu.pipeline_mode<synchronous>, transform_indices = @transform_2, window_bounds = array<i64: 256, 896>}, {pipeline_mode = #tpu.pipeline_mode<synchronous>, transform_indices = @transform_3, window_bounds = array<i64: 8, 896>}, {pipeline_mode = #tpu.pipeline_mode<synchronous>, transform_indices = @transform_4, window_bounds = array<i64: 8, 896>}, {transform_indices = @transform_5, window_bounds = array<i64: 8, 896>}]} {
    %0 = tpu.iota {dimensions = array<i32: 1>} : vector<1x128xi32>
    %c32_i32 = arith.constant 32 : i32
    %1 = vector.broadcast %c32_i32 : i32 to vector<1x128xi32>
    %2 = arith.cmpi sge, %0, %1 : vector<1x128xi32>
    %c64_i32 = arith.constant 64 : i32
    %3 = vector.broadcast %c64_i32 : i32 to vector<1x128xi32>
    %4 = arith.cmpi slt, %0, %3 : vector<1x128xi32>
    %5 = arith.andi %2, %4 : vector<1x128xi1>
    %6 = arith.extui %5 : vector<1x128xi1> to vector<1x128xi32>
    %7 = arith.sitofp %6 : vector<1x128xi32> to vector<1x128xf32>
    %c0 = arith.constant 0 : index
    %c0_0 = arith.constant 0 : index
    %8 = vector.load %arg1[%c0, %c0_0] : memref<8x256xf32, #tpu.memory_space<vmem>>, vector<8x256xf32>
    %9 = vector.extract_strided_slice %8 {offsets = [0, 0], sizes = [8, 128], strides = [1, 1]} : vector<8x256xf32> to vector<8x128xf32>
    %10 = arith.truncf %9 : vector<8x128xf32> to vector<8x128xbf16>
    %c0_1 = arith.constant 0 : index
    %c0_2 = arith.constant 0 : index
    %c0_3 = arith.constant 0 : index
    %11 = vector.load %arg2[%c0_1, %c0_2, %c0_3] : memref<7x128x256xbf16, #tpu.memory_space<vmem>>, vector<1x128x128xbf16>
    %12 = vector.shape_cast %11 : vector<1x128x128xbf16> to vector<128x128xbf16>
    %cst = arith.constant dense<0.000000e+00> : vector<8x128xf32>
    %13 = tpu.matmul %10, %12, %cst {dimension_numbers = #tpu.dot_dimension_numbers<[1], [0], [0], [1], [0, 0, 1, 1], [], []>} : vector<8x128xbf16>, vector<128x128xbf16>, vector<8x128xf32> -> vector<8x128xf32>
    %c0_4 = arith.constant 0 : index
    %c0_5 = arith.constant 0 : index
    %14 = vector.load %arg4[%c0_4, %c0_5] : memref<8x896xf32, #tpu.memory_space<vmem>>, vector<1x128xf32>
    %15 = vector.broadcast %14 : vector<1x128xf32> to vector<8x128xf32>
    %16 = arith.addf %13, %15 : vector<8x128xf32>
    %c0_6 = arith.constant 0 : index
    %c0_7 = arith.constant 0 : index
    %17 = vector.load %arg5[%c0_6, %c0_7] : memref<8x896xf32, #tpu.memory_space<vmem>>, vector<1x128xf32>
    %18 = vector.broadcast %17 : vector<1x128xf32> to vector<8x128xf32>
    %19 = arith.mulf %18, %16 : vector<8x128xf32>
    %20 = math.tanh %19 : vector<8x128xf32>
    %cst_8 = arith.constant 5.000000e-01 : f32
    %21 = vector.broadcast %cst_8 : f32 to vector<8x128xf32>
    %22 = arith.mulf %21, %20 : vector<8x128xf32>
    %cst_9 = arith.constant 5.000000e-01 : f32
    %23 = vector.broadcast %cst_9 : f32 to vector<8x128xf32>
    %24 = arith.addf %22, %23 : vector<8x128xf32>
    %25 = arith.mulf %16, %24 : vector<8x128xf32>
    %26 = arith.truncf %25 : vector<8x128xf32> to vector<8x128xbf16>
    %c1 = arith.constant 1 : index
    %c0_10 = arith.constant 0 : index
    %c0_11 = arith.constant 0 : index
    %27 = vector.load %arg2[%c1, %c0_10, %c0_11] : memref<7x128x256xbf16, #tpu.memory_space<vmem>>, vector<1x128x128xbf16>
    %28 = vector.shape_cast %27 : vector<1x128x128xbf16> to vector<128x128xbf16>
    %cst_12 = arith.constant dense<0.000000e+00> : vector<8x128xf32>
    %29 = tpu.matmul %26, %28, %cst_12 {dimension_numbers = #tpu.dot_dimension_numbers<[1], [0], [0], [1], [0, 0, 1, 1], [], []>} : vector<8x128xbf16>, vector<128x128xbf16>, vector<8x128xf32> -> vector<8x128xf32>
    %c1_13 = arith.constant 1 : index
    %c0_14 = arith.constant 0 : index
    %30 = vector.load %arg4[%c1_13, %c0_14] : memref<8x896xf32, #tpu.memory_space<vmem>>, vector<1x128xf32>
    %31 = vector.broadcast %30 : vector<1x128xf32> to vector<8x128xf32>
    %32 = arith.addf %29, %31 : vector<8x128xf32>
    %c1_15 = arith.constant 1 : index
    %c0_16 = arith.constant 0 : index
    %33 = vector.load %arg5[%c1_15, %c0_16] : memref<8x896xf32, #tpu.memory_space<vmem>>, vector<1x128xf32>
    %34 = vector.broadcast %33 : vector<1x128xf32> to vector<8x128xf32>
    %35 = arith.mulf %34, %32 : vector<8x128xf32>
    %36 = math.tanh %35 : vector<8x128xf32>
    %cst_17 = arith.constant 5.000000e-01 : f32
    %37 = vector.broadcast %cst_17 : f32 to vector<8x128xf32>
    %38 = arith.mulf %37, %36 : vector<8x128xf32>
    %cst_18 = arith.constant 5.000000e-01 : f32
    %39 = vector.broadcast %cst_18 : f32 to vector<8x128xf32>
    %40 = arith.addf %38, %39 : vector<8x128xf32>
    %41 = arith.mulf %32, %40 : vector<8x128xf32>
    %42 = arith.truncf %41 : vector<8x128xf32> to vector<8x128xbf16>
    %c2 = arith.constant 2 : index
    %c0_19 = arith.constant 0 : index
    %c0_20 = arith.constant 0 : index
    %43 = vector.load %arg2[%c2, %c0_19, %c0_20] : memref<7x128x256xbf16, #tpu.memory_space<vmem>>, vector<1x128x128xbf16>
    %44 = vector.shape_cast %43 : vector<1x128x128xbf16> to vector<128x128xbf16>
    %cst_21 = arith.constant dense<0.000000e+00> : vector<8x128xf32>
    %45 = tpu.matmul %42, %44, %cst_21 {dimension_numbers = #tpu.dot_dimension_numbers<[1], [0], [0], [1], [0, 0, 1, 1], [], []>} : vector<8x128xbf16>, vector<128x128xbf16>, vector<8x128xf32> -> vector<8x128xf32>
    %c2_22 = arith.constant 2 : index
    %c0_23 = arith.constant 0 : index
    %46 = vector.load %arg4[%c2_22, %c0_23] : memref<8x896xf32, #tpu.memory_space<vmem>>, vector<1x128xf32>
    %47 = vector.broadcast %46 : vector<1x128xf32> to vector<8x128xf32>
    %48 = arith.addf %45, %47 : vector<8x128xf32>
    %c2_24 = arith.constant 2 : index
    %c0_25 = arith.constant 0 : index
    %49 = vector.load %arg5[%c2_24, %c0_25] : memref<8x896xf32, #tpu.memory_space<vmem>>, vector<1x128xf32>
    %50 = vector.broadcast %49 : vector<1x128xf32> to vector<8x128xf32>
    %51 = arith.mulf %50, %48 : vector<8x128xf32>
    %52 = math.tanh %51 : vector<8x128xf32>
    %cst_26 = arith.constant 5.000000e-01 : f32
    %53 = vector.broadcast %cst_26 : f32 to vector<8x128xf32>
    %54 = arith.mulf %53, %52 : vector<8x128xf32>
    %cst_27 = arith.constant 5.000000e-01 : f32
    %55 = vector.broadcast %cst_27 : f32 to vector<8x128xf32>
    %56 = arith.addf %54, %55 : vector<8x128xf32>
    %57 = arith.mulf %48, %56 : vector<8x128xf32>
    %58 = vector.extract_strided_slice %8 {offsets = [0, 128], sizes = [8, 128], strides = [1, 1]} : vector<8x256xf32> to vector<8x128xf32>
    %59 = arith.truncf %58 : vector<8x128xf32> to vector<8x128xbf16>
    %c3 = arith.constant 3 : index
    %c0_28 = arith.constant 0 : index
    %c0_29 = arith.constant 0 : index
    %60 = vector.load %arg2[%c3, %c0_28, %c0_29] : memref<7x128x256xbf16, #tpu.memory_space<vmem>>, vector<1x128x128xbf16>
    %61 = vector.shape_cast %60 : vector<1x128x128xbf16> to vector<128x128xbf16>
    %cst_30 = arith.constant dense<0.000000e+00> : vector<8x128xf32>
    %62 = tpu.matmul %59, %61, %cst_30 {dimension_numbers = #tpu.dot_dimension_numbers<[1], [0], [0], [1], [0, 0, 1, 1], [], []>} : vector<8x128xbf16>, vector<128x128xbf16>, vector<8x128xf32> -> vector<8x128xf32>
    %c3_31 = arith.constant 3 : index
    %c0_32 = arith.constant 0 : index
    %63 = vector.load %arg4[%c3_31, %c0_32] : memref<8x896xf32, #tpu.memory_space<vmem>>, vector<1x128xf32>
    %64 = vector.broadcast %63 : vector<1x128xf32> to vector<8x128xf32>
    %65 = arith.addf %62, %64 : vector<8x128xf32>
    %c3_33 = arith.constant 3 : index
    %c0_34 = arith.constant 0 : index
    %66 = vector.load %arg5[%c3_33, %c0_34] : memref<8x896xf32, #tpu.memory_space<vmem>>, vector<1x128xf32>
    %67 = vector.broadcast %66 : vector<1x128xf32> to vector<8x128xf32>
    %68 = arith.mulf %67, %65 : vector<8x128xf32>
    %69 = math.tanh %68 : vector<8x128xf32>
    %cst_35 = arith.constant 5.000000e-01 : f32
    %70 = vector.broadcast %cst_35 : f32 to vector<8x128xf32>
    %71 = arith.mulf %70, %69 : vector<8x128xf32>
    %cst_36 = arith.constant 5.000000e-01 : f32
    %72 = vector.broadcast %cst_36 : f32 to vector<8x128xf32>
    %73 = arith.addf %71, %72 : vector<8x128xf32>
    %74 = arith.mulf %65, %73 : vector<8x128xf32>
    %75 = arith.truncf %74 : vector<8x128xf32> to vector<8x128xbf16>
    %c4 = arith.constant 4 : index
    %c0_37 = arith.constant 0 : index
    %c0_38 = arith.constant 0 : index
    %76 = vector.load %arg2[%c4, %c0_37, %c0_38] : memref<7x128x256xbf16, #tpu.memory_space<vmem>>, vector<1x128x128xbf16>
    %77 = vector.shape_cast %76 : vector<1x128x128xbf16> to vector<128x128xbf16>
    %cst_39 = arith.constant dense<0.000000e+00> : vector<8x128xf32>
    %78 = tpu.matmul %75, %77, %cst_39 {dimension_numbers = #tpu.dot_dimension_numbers<[1], [0], [0], [1], [0, 0, 1, 1], [], []>} : vector<8x128xbf16>, vector<128x128xbf16>, vector<8x128xf32> -> vector<8x128xf32>
    %c4_40 = arith.constant 4 : index
    %c0_41 = arith.constant 0 : index
    %79 = vector.load %arg4[%c4_40, %c0_41] : memref<8x896xf32, #tpu.memory_space<vmem>>, vector<1x128xf32>
    %80 = vector.broadcast %79 : vector<1x128xf32> to vector<8x128xf32>
    %81 = arith.addf %78, %80 : vector<8x128xf32>
    %c4_42 = arith.constant 4 : index
    %c0_43 = arith.constant 0 : index
    %82 = vector.load %arg5[%c4_42, %c0_43] : memref<8x896xf32, #tpu.memory_space<vmem>>, vector<1x128xf32>
    %83 = vector.broadcast %82 : vector<1x128xf32> to vector<8x128xf32>
    %84 = arith.mulf %83, %81 : vector<8x128xf32>
    %85 = math.tanh %84 : vector<8x128xf32>
    %cst_44 = arith.constant 5.000000e-01 : f32
    %86 = vector.broadcast %cst_44 : f32 to vector<8x128xf32>
    %87 = arith.mulf %86, %85 : vector<8x128xf32>
    %cst_45 = arith.constant 5.000000e-01 : f32
    %88 = vector.broadcast %cst_45 : f32 to vector<8x128xf32>
    %89 = arith.addf %87, %88 : vector<8x128xf32>
    %90 = arith.mulf %81, %89 : vector<8x128xf32>
    %91 = arith.truncf %57 : vector<8x128xf32> to vector<8x128xbf16>
    %c5 = arith.constant 5 : index
    %c0_46 = arith.constant 0 : index
    %c0_47 = arith.constant 0 : index
    %92 = vector.load %arg2[%c5, %c0_46, %c0_47] : memref<7x128x256xbf16, #tpu.memory_space<vmem>>, vector<1x128x128xbf16>
    %93 = vector.shape_cast %92 : vector<1x128x128xbf16> to vector<128x128xbf16>
    %cst_48 = arith.constant dense<0.000000e+00> : vector<8x128xf32>
    %94 = tpu.matmul %91, %93, %cst_48 {dimension_numbers = #tpu.dot_dimension_numbers<[1], [0], [0], [1], [0, 0, 1, 1], [], []>} : vector<8x128xbf16>, vector<128x128xbf16>, vector<8x128xf32> -> vector<8x128xf32>
    %c5_49 = arith.constant 5 : index
    %c0_50 = arith.constant 0 : index
    %95 = vector.load %arg4[%c5_49, %c0_50] : memref<8x896xf32, #tpu.memory_space<vmem>>, vector<1x128xf32>
    %96 = vector.broadcast %95 : vector<1x128xf32> to vector<8x128xf32>
    %97 = arith.addf %94, %96 : vector<8x128xf32>
    %c5_51 = arith.constant 5 : index
    %c0_52 = arith.constant 0 : index
    %98 = vector.load %arg5[%c5_51, %c0_52] : memref<8x896xf32, #tpu.memory_space<vmem>>, vector<1x128xf32>
    %99 = vector.broadcast %98 : vector<1x128xf32> to vector<8x128xf32>
    %100 = arith.mulf %99, %97 : vector<8x128xf32>
    %101 = math.tanh %100 : vector<8x128xf32>
    %cst_53 = arith.constant 5.000000e-01 : f32
    %102 = vector.broadcast %cst_53 : f32 to vector<8x128xf32>
    %103 = arith.mulf %102, %101 : vector<8x128xf32>
    %cst_54 = arith.constant 5.000000e-01 : f32
    %104 = vector.broadcast %cst_54 : f32 to vector<8x128xf32>
    %105 = arith.addf %103, %104 : vector<8x128xf32>
    %106 = arith.mulf %97, %105 : vector<8x128xf32>
    %107 = vector.broadcast %7 : vector<1x128xf32> to vector<8x128xf32>
    %108 = arith.addf %90, %107 : vector<8x128xf32>
    %109 = arith.mulf %106, %108 : vector<8x128xf32>
    %110 = arith.truncf %109 : vector<8x128xf32> to vector<8x128xbf16>
    %c6 = arith.constant 6 : index
    %c0_55 = arith.constant 0 : index
    %c0_56 = arith.constant 0 : index
    %111 = vector.load %arg2[%c6, %c0_55, %c0_56] : memref<7x128x256xbf16, #tpu.memory_space<vmem>>, vector<1x128x256xbf16>
    %112 = vector.shape_cast %111 : vector<1x128x256xbf16> to vector<128x256xbf16>
    %cst_57 = arith.constant dense<0.000000e+00> : vector<8x256xf32>
    %113 = tpu.matmul %110, %112, %cst_57 {dimension_numbers = #tpu.dot_dimension_numbers<[1], [0], [0], [1], [0, 0, 1, 1], [], []>} : vector<8x128xbf16>, vector<128x256xbf16>, vector<8x256xf32> -> vector<8x256xf32>
    %c6_58 = arith.constant 6 : index
    %c0_59 = arith.constant 0 : index
    %114 = vector.load %arg4[%c6_58, %c0_59] : memref<8x896xf32, #tpu.memory_space<vmem>>, vector<1x256xf32>
    %115 = vector.broadcast %114 : vector<1x256xf32> to vector<8x256xf32>
    %116 = arith.addf %113, %115 : vector<8x256xf32>
    %c6_60 = arith.constant 6 : index
    %c0_61 = arith.constant 0 : index
    %117 = vector.load %arg5[%c6_60, %c0_61] : memref<8x896xf32, #tpu.memory_space<vmem>>, vector<1x256xf32>
    %118 = vector.broadcast %117 : vector<1x256xf32> to vector<8x256xf32>
    %119 = arith.mulf %118, %116 : vector<8x256xf32>
    %120 = math.tanh %119 : vector<8x256xf32>
    %cst_62 = arith.constant 5.000000e-01 : f32
    %121 = vector.broadcast %cst_62 : f32 to vector<8x256xf32>
    %122 = arith.mulf %121, %120 : vector<8x256xf32>
    %cst_63 = arith.constant 5.000000e-01 : f32
    %123 = vector.broadcast %cst_63 : f32 to vector<8x256xf32>
    %124 = arith.addf %122, %123 : vector<8x256xf32>
    %125 = arith.mulf %116, %124 : vector<8x256xf32>
    %126 = arith.truncf %125 : vector<8x256xf32> to vector<8x256xbf16>
    %c0_64 = arith.constant 0 : index
    %c0_65 = arith.constant 0 : index
    %127 = vector.load %arg3[%c0_64, %c0_65] : memref<256x896xbf16, #tpu.memory_space<vmem>>, vector<256x896xbf16>
    %cst_66 = arith.constant dense<0.000000e+00> : vector<8x896xf32>
    %128 = tpu.matmul %126, %127, %cst_66 {dimension_numbers = #tpu.dot_dimension_numbers<[1], [0], [0], [1], [0, 0, 1, 1], [], []>} : vector<8x256xbf16>, vector<256x896xbf16>, vector<8x896xf32> -> vector<8x896xf32>
    %c7 = arith.constant 7 : index
    %c0_67 = arith.constant 0 : index
    %129 = vector.load %arg4[%c7, %c0_67] : memref<8x896xf32, #tpu.memory_space<vmem>>, vector<1x896xf32>
    %130 = vector.broadcast %129 : vector<1x896xf32> to vector<8x896xf32>
    %131 = arith.addf %128, %130 : vector<8x896xf32>
    %c7_68 = arith.constant 7 : index
    %c0_69 = arith.constant 0 : index
    %132 = vector.load %arg5[%c7_68, %c0_69] : memref<8x896xf32, #tpu.memory_space<vmem>>, vector<1x896xf32>
    %133 = vector.broadcast %132 : vector<1x896xf32> to vector<8x896xf32>
    %134 = arith.mulf %133, %131 : vector<8x896xf32>
    %135 = math.tanh %134 : vector<8x896xf32>
    %cst_70 = arith.constant 5.000000e-01 : f32
    %136 = vector.broadcast %cst_70 : f32 to vector<8x896xf32>
    %137 = arith.mulf %136, %135 : vector<8x896xf32>
    %cst_71 = arith.constant 5.000000e-01 : f32
    %138 = vector.broadcast %cst_71 : f32 to vector<8x896xf32>
    %139 = arith.addf %137, %138 : vector<8x896xf32>
    %140 = arith.mulf %131, %139 : vector<8x896xf32>
    %c0_72 = arith.constant 0 : index
    %c0_73 = arith.constant 0 : index
    %141 = vector.load %arg6[%c0_72, %c0_73] : memref<8x896xf32, #tpu.memory_space<vmem>>, vector<8x896xf32>
    tpu.vector_store %arg6[%c0_72, %c0_73], %140 {strides = array<i32>} : memref<8x896xf32, #tpu.memory_space<vmem>>, vector<8x896xf32>,
    return
  }
  func.func @transform_0(%arg0: i32) -> (i32, i32) {
    %c0_i32 = arith.constant 0 : i32
    %c0_i32_0 = arith.constant 0 : i32
    return %arg0, %c0_i32 : i32, i32
  }
  func.func @transform_1(%arg0: i32) -> (i32, i32, i32) {
    %c0_i32 = arith.constant 0 : i32
    %c0_i32_0 = arith.constant 0 : i32
    %c0_i32_1 = arith.constant 0 : i32
    %c0_i32_2 = arith.constant 0 : i32
    return %c0_i32, %c0_i32_0, %c0_i32_1 : i32, i32, i32
  }
  func.func @transform_2(%arg0: i32) -> (i32, i32) {
    %c0_i32 = arith.constant 0 : i32
    %c0_i32_0 = arith.constant 0 : i32
    %c0_i32_1 = arith.constant 0 : i32
    return %c0_i32, %c0_i32_0 : i32, i32
  }
  func.func @transform_3(%arg0: i32) -> (i32, i32) {
    %c0_i32 = arith.constant 0 : i32
    %c0_i32_0 = arith.constant 0 : i32
    %c0_i32_1 = arith.constant 0 : i32
    return %c0_i32, %c0_i32_0 : i32, i32
  }
  func.func @transform_4(%arg0: i32) -> (i32, i32) {
    %c0_i32 = arith.constant 0 : i32
    %c0_i32_0 = arith.constant 0 : i32
    %c0_i32_1 = arith.constant 0 : i32
    return %c0_i32, %c0_i32_0 : i32, i32
  }
  func.func @transform_5(%arg0: i32) -> (i32, i32) {
    %c0_i32 = arith.constant 0 : i32
    %c0_i32_0 = arith.constant 0 : i32
    return %arg0, %c0_i32 : i32, i32
  }
}

</mosaic_0001>

<llo_original>
// kernel: tpu_custom_call.1
$region0: #{tpu_custom_call.1}
  #allocation0 [shape = 'u32[]', space=smem, size = 0x4, offset = 0x4, fixed_abs, tag = 'smem constant byte address 0x4 - core index']
  #allocation1 [shape = 'u32[144,128]{1,0:T(1,128)}', space=vmem, size = 0x12000, scoped, tag = 'internal scratch']
  %s0 = inlined_call_operand.hbm [shape: f32[8,256], index: 0, kind: input, shape index: {}]
  %s1 = inlined_call_operand.hbm [shape: bf16[7,128,256], index: 1, kind: input, shape index: {}]
  %s2 = inlined_call_operand.hbm [shape: bf16[256,896], index: 2, kind: input, shape index: {}]
  %s3 = inlined_call_operand.hbm [shape: f32[8,896], index: 3, kind: input, shape index: {}]
  %s4 = inlined_call_operand.hbm [shape: f32[8,896], index: 4, kind: input, shape index: {}]
  %s5 = inlined_call_operand.hbm [shape: f32[8,896], index: 5, kind: output, shape index: {}]
  %s6 = sld [smem:[#allocation0]]
  $region50: #{tpu_custom_call.1} parent=0
    _
  %s8 = ssub.s32 1, %s6
  %s9 = scalar_select 0, %s8, %s6
  $region1: #{tpu_custom_call.1} parent=0
    #allocation2 [shape = 'u8[8192]{0}', space=vmem, size = 0x2000, scoped, tag = 'input window, operand 0, single buffered']
    #allocation3 [shape = 's32[1]{0}', space=sflag, size = 0x4, scoped, tag = 'scoped memory for tpu_custom_call.1']
    #allocation4 [shape = 's32[1]{0}', space=sflag, size = 0x4, scoped, tag = 'scoped memory for tpu_custom_call.1']
    #allocation5 [shape = 'u8[458752]{0}', space=vmem, size = 0x70000, scoped, tag = 'input window, operand 1, single buffered']
    #allocation6 [shape = 's32[1]{0}', space=sflag, size = 0x4, scoped, tag = 'scoped memory for tpu_custom_call.1']
    #allocation7 [shape = 'u8[458752]{0}', space=vmem, size = 0x70000, scoped, tag = 'input window, operand 2, single buffered']
    #allocation8 [shape = 'u8[28672]{0}', space=vmem, size = 0x7000, scoped, tag = 'input window, operand 3, single buffered']
    #allocation9 [shape = 's32[1]{0}', space=sflag, size = 0x4, scoped, tag = 'scoped memory for tpu_custom_call.1']
    #allocation10 [shape = 'u8[28672]{0}', space=vmem, size = 0x7000, scoped, tag = 'input window, operand 4, single buffered']
    #allocation11 [shape = 'u8[28672]{0}', space=vmem, size = 0x7000, scoped, tag = 'output window, operand 0, single buffered']
    %10 = vsyncpa [#allocation3], 0
    %11 = vsyncpa [#allocation6], 0
    %12 = vsyncpa [#allocation9], 0
    %13 = vsyncpa [#allocation4], 0
    // Predicated region
    $region2: #{tpu_custom_call.1} parent=1 // pred_check
      _
    $region3: #{tpu_custom_call.1} parent=1 // pred_check_branch
      %15 = sbr.rel (0) target = $region5
    $region4: #{tpu_custom_call.1} parent=1 // pred_region
      %s17 = ssub.s32 256, 256
      %18 = vsyncadd [#allocation3], %s17
      %s20 = sshll.u32 [#allocation2], 4
      %s21 = int_to_ptr.vmem [resolvable:$true] %s20
      %23 = dma.hbm_to_vmem [thread:$0]  %s0, 256, %s21, [#allocation3]
    $region5: #{tpu_custom_call.1} parent=1 // pred_fallthru
      _
    // Predicated region
    $region6: #{tpu_custom_call.1} parent=1 // pred_check
      _
    $region7: #{tpu_custom_call.1} parent=1 // pred_check_branch
      %25 = sbr.rel (0) target = $region9
    $region8: #{tpu_custom_call.1} parent=1 // pred_region
      %s27 = ssub.s32 14336, 14336
      %28 = vsyncadd [#allocation6], %s27
      %s29 = sshll.u32 [#allocation5], 4
      %s30 = int_to_ptr.vmem [resolvable:$true] %s29
      %35 = dma.hbm_to_vmem [thread:$0]  %s1, 14336, %s30, [#allocation6], 128, 128, 8
    $region9: #{tpu_custom_call.1} parent=1 // pred_fallthru
      _
    // Predicated region
    $region10: #{tpu_custom_call.1} parent=1 // pred_check
      _
    $region11: #{tpu_custom_call.1} parent=1 // pred_check_branch
      %37 = sbr.rel (0) target = $region13
    $region12: #{tpu_custom_call.1} parent=1 // pred_region
      %s39 = ssub.s32 14336, 14336
      %40 = vsyncadd [#allocation6], %s39
      %s41 = sshll.u32 [#allocation7], 4
      %s42 = int_to_ptr.vmem [resolvable:$true] %s41
      %47 = dma.hbm_to_vmem [thread:$0]  %s2, 14336, %s42, [#allocation6], 448, 448, 28
    $region13: #{tpu_custom_call.1} parent=1 // pred_fallthru
      _
    // Predicated region
    $region14: #{tpu_custom_call.1} parent=1 // pred_check
      _
    $region15: #{tpu_custom_call.1} parent=1 // pred_check_branch
      %49 = sbr.rel (0) target = $region17
    $region16: #{tpu_custom_call.1} parent=1 // pred_region
      %s51 = ssub.s32 896, 896
      %52 = vsyncadd [#allocation9], %s51
      %s54 = sshll.u32 [#allocation8], 4
      %s55 = int_to_ptr.vmem [resolvable:$true] %s54
      %57 = dma.hbm_to_vmem [thread:$0]  %s3, 896, %s55, [#allocation9]
    $region17: #{tpu_custom_call.1} parent=1 // pred_fallthru
      _
    // Predicated region
    $region18: #{tpu_custom_call.1} parent=1 // pred_check
      _
    $region19: #{tpu_custom_call.1} parent=1 // pred_check_branch
      %59 = sbr.rel (0) target = $region21
    $region20: #{tpu_custom_call.1} parent=1 // pred_region
      %s61 = ssub.s32 896, 896
      %62 = vsyncadd [#allocation9], %s61
      %s64 = sshll.u32 [#allocation10], 4
      %s65 = int_to_ptr.vmem [resolvable:$true] %s64
      %67 = dma.hbm_to_vmem [thread:$0]  %s4, 896, %s65, [#allocation9]
    $region21: #{tpu_custom_call.1} parent=1 // pred_fallthru
      _
    // Predicated region
    $region22: #{tpu_custom_call.1} parent=1 // pred_check
      _
    $region23: #{tpu_custom_call.1} parent=1 // pred_check_branch
      %69 = sbr.rel (0) target = $region25
    $region24: #{tpu_custom_call.1} parent=1 // pred_region
      %70 = dma.done [#allocation3], 256
    $region25: #{tpu_custom_call.1} parent=1 // pred_fallthru
      _
    // Predicated region
    $region26: #{tpu_custom_call.1} parent=1 // pred_check
      _
    $region27: #{tpu_custom_call.1} parent=1 // pred_check_branch
      %72 = sbr.rel (0) target = $region29
    $region28: #{tpu_custom_call.1} parent=1 // pred_region
      %73 = dma.done [#allocation6], 14336
    $region29: #{tpu_custom_call.1} parent=1 // pred_fallthru
      _
    // Predicated region
    $region30: #{tpu_custom_call.1} parent=1 // pred_check
      _
    $region31: #{tpu_custom_call.1} parent=1 // pred_check_branch
      %75 = sbr.rel (0) target = $region33
    $region32: #{tpu_custom_call.1} parent=1 // pred_region
      %76 = dma.done [#allocation6], 14336
    $region33: #{tpu_custom_call.1} parent=1 // pred_fallthru
      _
    // Predicated region
    $region34: #{tpu_custom_call.1} parent=1 // pred_check
      _
    $region35: #{tpu_custom_call.1} parent=1 // pred_check_branch
      %78 = sbr.rel (0) target = $region37
    $region36: #{tpu_custom_call.1} parent=1 // pred_region
      %79 = dma.done [#allocation9], 896
    $region37: #{tpu_custom_call.1} parent=1 // pred_fallthru
      _
    // Predicated region
    $region38: #{tpu_custom_call.1} parent=1 // pred_check
      _
    $region39: #{tpu_custom_call.1} parent=1 // pred_check_branch
      %81 = sbr.rel (0) target = $region41
    $region40: #{tpu_custom_call.1} parent=1 // pred_region
      %82 = dma.done [#allocation9], 896
    $region41: #{tpu_custom_call.1} parent=1 // pred_fallthru
      _
    %v84 = vlaneseq
    %v85 = vand.u32 %v84, 127
    %vm86 = vcmp.ge.s32.totalorder %v85, 32
    %vm87 = vcmp.lt.s32.totalorder %v85, 64
    %vm88 = vmand %vm86, %vm87
    %v89 = vsel %vm88, 1, 0
    %v90 = vcvt.s32.f32 %v89
    %v91 = vld [vmem:[#allocation2] sm:$0xff]
    %v92 = vld [vmem:[#allocation2 + $0x8] sm:$0xff]
    %v93 = vpack.c.bf16 %v91, %v91
    %v94 = vld [vmem:[#allocation5] sm:$0xf]
    %v95 = vld [vmem:[#allocation5 + $0x8] sm:$0xf]
    %v96 = vld [vmem:[#allocation5 + $0x10] sm:$0xf]
    %v97 = vld [vmem:[#allocation5 + $0x18] sm:$0xf]
    %v98 = vld [vmem:[#allocation5 + $0x20] sm:$0xf]
    %v99 = vld [vmem:[#allocation5 + $0x28] sm:$0xf]
    %v100 = vld [vmem:[#allocation5 + $0x30] sm:$0xf]
    %v101 = vld [vmem:[#allocation5 + $0x38] sm:$0xf]
    %v102 = vld [vmem:[#allocation5 + $0x40] sm:$0xf]
    %v103 = vld [vmem:[#allocation5 + $0x48] sm:$0xf]
    %v104 = vld [vmem:[#allocation5 + $0x50] sm:$0xf]
    %v105 = vld [vmem:[#allocation5 + $0x58] sm:$0xf]
    %v106 = vld [vmem:[#allocation5 + $0x60] sm:$0xf]
    %v107 = vld [vmem:[#allocation5 + $0x68] sm:$0xf]
    %v108 = vld [vmem:[#allocation5 + $0x70] sm:$0xf]
    %v109 = vld [vmem:[#allocation5 + $0x78] sm:$0xf]
    %v110 = vld [vmem:[#allocation8] ss:$0 sm:$0xff]
    %v127 = vunpack.c.l.b16 %v94
    %v128 = vunpack.c.l.b16 %v95
    %v129 = vunpack.c.l.b16 %v96
    %v130 = vunpack.c.l.b16 %v97
    %v131 = vunpack.c.l.b16 %v98
    %v132 = vunpack.c.l.b16 %v99
    %v133 = vunpack.c.l.b16 %v100
    %v134 = vunpack.c.l.b16 %v101
    %v135 = vunpack.c.l.b16 %v102
    %v136 = vunpack.c.l.b16 %v103
    %v137 = vunpack.c.l.b16 %v104
    %v138 = vunpack.c.l.b16 %v105
    %v139 = vunpack.c.l.b16 %v106
    %v140 = vunpack.c.l.b16 %v107
    %v141 = vunpack.c.l.b16 %v108
    %v142 = vunpack.c.l.b16 %v109
    %v143 = vpack.c.b16 %v128, %v127
    %v144 = vpack.c.b16 %v130, %v129
    %v145 = vpack.c.b16 %v132, %v131
    %v146 = vpack.c.b16 %v134, %v133
    %v147 = vpack.c.b16 %v136, %v135
    %v148 = vpack.c.b16 %v138, %v137
    %v149 = vpack.c.b16 %v140, %v139
    %v150 = vpack.c.b16 %v142, %v141
    %159 = vmatprep.subr.bf16.mxu0 0
    %160 = vmatpush1.bf16.msra.mxu0 %v143
    %161 = vmatprep.subr.bf16.mxu0 0
    %162 = vmatpush1.bf16.msra.mxu0 %v144
    %163 = vmatprep.subr.bf16.mxu0 0
    %164 = vmatpush1.bf16.msra.mxu0 %v145
    %165 = vmatprep.subr.bf16.mxu0 0
    %166 = vmatpush1.bf16.msra.mxu0 %v146
    %167 = vmatprep.subr.bf16.mxu0 0
    %168 = vmatpush1.bf16.msra.mxu0 %v147
    %169 = vmatprep.subr.bf16.mxu0 0
    %170 = vmatpush1.bf16.msra.mxu0 %v148
    %171 = vmatprep.subr.bf16.mxu0 0
    %172 = vmatpush1.bf16.msra.mxu0 %v149
    %173 = vmatprep.subr.bf16.mxu0 0
    %174 = vmatpush1.bf16.msra.mxu0 %v150
    %175 = vmatprep.subr.bf16.mxu0 0
    %176 = vmatpush1.bf16.msra.mxu0 0
    %177 = vmatprep.subr.bf16.mxu0 0
    %178 = vmatpush1.bf16.msra.mxu0 0
    %179 = vmatprep.subr.bf16.mxu0 0
    %180 = vmatpush1.bf16.msra.mxu0 0
    %181 = vmatprep.subr.bf16.mxu0 0
    %182 = vmatpush1.bf16.msra.mxu0 0
    %183 = vmatprep.subr.bf16.mxu0 0
    %184 = vmatpush1.bf16.msra.mxu0 0
    %185 = vmatprep.subr.bf16.mxu0 0
    %186 = vmatpush1.bf16.msra.mxu0 0
    %187 = vmatprep.subr.bf16.mxu0 0
    %188 = vmatpush1.bf16.msra.mxu0 0
    %189 = vmatprep.subr.bf16.mxu0 0
    %190 = vmatpush1.bf16.msra.mxu0 0
    %191 = vmatprep.mubr.bf16.mxu0 0
    %192 = vmatmul.mubr.bf16.gmra.mrb[0].mxu0 %v93
    %v193 = vpop.f32.mrb[0].mxu0
    %v194 = vadd.f32 %v110, %v193
    %v195 = vpop.f32.mrb[0].mxu0
    %v196 = vpop.f32.mrb[0].mxu0
    %v197 = vpop.f32.mrb[0].mxu0
    %198 = vdwg.mxu0
    %v199 = vld [vmem:[#allocation10] ss:$0 sm:$0xff]
    %v200 = vmul.f32 %v199, %v194
    %v201 = vtanh.pop %v200
    %v202 = vmul.f32 %v201, 0.5
    %v203 = vadd.f32 %v202, 0.5
    %v204 = vmul.f32 %v194, %v203
    %v205 = vpack.c.bf16 %v204, %v204
    %s206 = scalar_lea.vmem [#allocation5], 128
    %v207 = vld [vmem:[%s206] sm:$0xf]
    %v208 = vld [vmem:[%s206 + $0x8] sm:$0xf]
    %v209 = vld [vmem:[%s206 + $0x10] sm:$0xf]
    %v210 = vld [vmem:[%s206 + $0x18] sm:$0xf]
    %v211 = vld [vmem:[%s206 + $0x20] sm:$0xf]
    %v212 = vld [vmem:[%s206 + $0x28] sm:$0xf]
    %v213 = vld [vmem:[%s206 + $0x30] sm:$0xf]
    %v214 = vld [vmem:[%s206 + $0x38] sm:$0xf]
    %v215 = vld [vmem:[%s206 + $0x40] sm:$0xf]
    %v216 = vld [vmem:[%s206 + $0x48] sm:$0xf]
    %v217 = vld [vmem:[%s206 + $0x50] sm:$0xf]
    %v218 = vld [vmem:[%s206 + $0x58] sm:$0xf]
    %v219 = vld [vmem:[%s206 + $0x60] sm:$0xf]
    %v220 = vld [vmem:[%s206 + $0x68] sm:$0xf]
    %v221 = vld [vmem:[%s206 + $0x70] sm:$0xf]
    %v222 = vld [vmem:[%s206 + $0x78] sm:$0xf]
    %v223 = vld [vmem:[#allocation8 + $0x1] ss:$0 sm:$0xff]
    %v240 = vunpack.c.l.b16 %v207
    %v241 = vunpack.c.l.b16 %v208
    %v242 = vunpack.c.l.b16 %v209
    %v243 = vunpack.c.l.b16 %v210
    %v244 = vunpack.c.l.b16 %v211
    %v245 = vunpack.c.l.b16 %v212
    %v246 = vunpack.c.l.b16 %v213
    %v247 = vunpack.c.l.b16 %v214
    %v248 = vunpack.c.l.b16 %v215
    %v249 = vunpack.c.l.b16 %v216
    %v250 = vunpack.c.l.b16 %v217
    %v251 = vunpack.c.l.b16 %v218
    %v252 = vunpack.c.l.b16 %v219
    %v253 = vunpack.c.l.b16 %v220
    %v254 = vunpack.c.l.b16 %v221
    %v255 = vunpack.c.l.b16 %v222
    %v256 = vpack.c.b16 %v241, %v240
    %v257 = vpack.c.b16 %v243, %v242
    %v258 = vpack.c.b16 %v245, %v244
    %v259 = vpack.c.b16 %v247, %v246
    %v260 = vpack.c.b16 %v249, %v248
    %v261 = vpack.c.b16 %v251, %v250
    %v262 = vpack.c.b16 %v253, %v252
    %v263 = vpack.c.b16 %v255, %v254
    %272 = vmatprep.subr.bf16.mxu0 0
    %273 = vmatpush1.bf16.msra.mxu0 %v256
    %274 = vmatprep.subr.bf16.mxu0 0
    %275 = vmatpush1.bf16.msra.mxu0 %v257
    %276 = vmatprep.subr.bf16.mxu0 0
    %277 = vmatpush1.bf16.msra.mxu0 %v258
    %278 = vmatprep.subr.bf16.mxu0 0
    %279 = vmatpush1.bf16.msra.mxu0 %v259
    %280 = vmatprep.subr.bf16.mxu0 0
    %281 = vmatpush1.bf16.msra.mxu0 %v260
    %282 = vmatprep.subr.bf16.mxu0 0
    %283 = vmatpush1.bf16.msra.mxu0 %v261
    %284 = vmatprep.subr.bf16.mxu0 0
    %285 = vmatpush1.bf16.msra.mxu0 %v262
    %286 = vmatprep.subr.bf16.mxu0 0
    %287 = vmatpush1.bf16.msra.mxu0 %v263
    %288 = vmatprep.subr.bf16.mxu0 0
    %289 = vmatpush1.bf16.msra.mxu0 0
    %290 = vmatprep.subr.bf16.mxu0 0
    %291 = vmatpush1.bf16.msra.mxu0 0
    %292 = vmatprep.subr.bf16.mxu0 0
    %293 = vmatpush1.bf16.msra.mxu0 0
    %294 = vmatprep.subr.bf16.mxu0 0
    %295 = vmatpush1.bf16.msra.mxu0 0
    %296 = vmatprep.subr.bf16.mxu0 0
    %297 = vmatpush1.bf16.msra.mxu0 0
    %298 = vmatprep.subr.bf16.mxu0 0
    %299 = vmatpush1.bf16.msra.mxu0 0
    %300 = vmatprep.subr.bf16.mxu0 0
    %301 = vmatpush1.bf16.msra.mxu0 0
    %302 = vmatprep.subr.bf16.mxu0 0
    %303 = vmatpush1.bf16.msra.mxu0 0
    %304 = vmatprep.mubr.bf16.mxu0 0
    %305 = vmatmul.mubr.bf16.gmra.mrb[0].mxu0 %v205
    %v306 = vpop.f32.mrb[0].mxu0
    %v307 = vadd.f32 %v223, %v306
    %v308 = vpop.f32.mrb[0].mxu0
    %v309 = vpop.f32.mrb[0].mxu0
    %v310 = vpop.f32.mrb[0].mxu0
    %311 = vdwg.mxu0
    %v312 = vld [vmem:[#allocation10 + $0x1] ss:$0 sm:$0xff]
    %v313 = vmul.f32 %v312, %v307
    %v314 = vtanh.pop %v313
    %v315 = vmul.f32 %v314, 0.5
    %v316 = vadd.f32 %v315, 0.5
    %v317 = vmul.f32 %v307, %v316
    %v318 = vpack.c.bf16 %v317, %v317
    %s319 = scalar_lea.vmem [#allocation5], 256
    %v320 = vld [vmem:[%s319] sm:$0xf]
    %v321 = vld [vmem:[%s319 + $0x8] sm:$0xf]
    %v322 = vld [vmem:[%s319 + $0x10] sm:$0xf]
    %v323 = vld [vmem:[%s319 + $0x18] sm:$0xf]
    %v324 = vld [vmem:[%s319 + $0x20] sm:$0xf]
    %v325 = vld [vmem:[%s319 + $0x28] sm:$0xf]
    %v326 = vld [vmem:[%s319 + $0x30] sm:$0xf]
    %v327 = vld [vmem:[%s319 + $0x38] sm:$0xf]
    %v328 = vld [vmem:[%s319 + $0x40] sm:$0xf]
    %v329 = vld [vmem:[%s319 + $0x48] sm:$0xf]
    %v330 = vld [vmem:[%s319 + $0x50] sm:$0xf]
    %v331 = vld [vmem:[%s319 + $0x58] sm:$0xf]
    %v332 = vld [vmem:[%s319 + $0x60] sm:$0xf]
    %v333 = vld [vmem:[%s319 + $0x68] sm:$0xf]
    %v334 = vld [vmem:[%s319 + $0x70] sm:$0xf]
    %v335 = vld [vmem:[%s319 + $0x78] sm:$0xf]
    %v336 = vld [vmem:[#allocation8 + $0x2] ss:$0 sm:$0xff]
    %v353 = vunpack.c.l.b16 %v320
    %v354 = vunpack.c.l.b16 %v321
    %v355 = vunpack.c.l.b16 %v322
    %v356 = vunpack.c.l.b16 %v323
    %v357 = vunpack.c.l.b16 %v324
    %v358 = vunpack.c.l.b16 %v325
    %v359 = vunpack.c.l.b16 %v326
    %v360 = vunpack.c.l.b16 %v327
    %v361 = vunpack.c.l.b16 %v328
    %v362 = vunpack.c.l.b16 %v329
    %v363 = vunpack.c.l.b16 %v330
    %v364 = vunpack.c.l.b16 %v331
    %v365 = vunpack.c.l.b16 %v332
    %v366 = vunpack.c.l.b16 %v333
    %v367 = vunpack.c.l.b16 %v334
    %v368 = vunpack.c.l.b16 %v335
    %v369 = vpack.c.b16 %v354, %v353
    %v370 = vpack.c.b16 %v356, %v355
    %v371 = vpack.c.b16 %v358, %v357
    %v372 = vpack.c.b16 %v360, %v359
    %v373 = vpack.c.b16 %v362, %v361
    %v374 = vpack.c.b16 %v364, %v363
    %v375 = vpack.c.b16 %v366, %v365
    %v376 = vpack.c.b16 %v368, %v367
    %385 = vmatprep.subr.bf16.mxu0 0
    %386 = vmatpush1.bf16.msra.mxu0 %v369
    %387 = vmatprep.subr.bf16.mxu0 0
    %388 = vmatpush1.bf16.msra.mxu0 %v370
    %389 = vmatprep.subr.bf16.mxu0 0
    %390 = vmatpush1.bf16.msra.mxu0 %v371
    %391 = vmatprep.subr.bf16.mxu0 0
    %392 = vmatpush1.bf16.msra.mxu0 %v372
    %393 = vmatprep.subr.bf16.mxu0 0
    %394 = vmatpush1.bf16.msra.mxu0 %v373
    %395 = vmatprep.subr.bf16.mxu0 0
    %396 = vmatpush1.bf16.msra.mxu0 %v374
    %397 = vmatprep.subr.bf16.mxu0 0
    %398 = vmatpush1.bf16.msra.mxu0 %v375
    %399 = vmatprep.subr.bf16.mxu0 0
    %400 = vmatpush1.bf16.msra.mxu0 %v376
    %401 = vmatprep.subr.bf16.mxu0 0
    %402 = vmatpush1.bf16.msra.mxu0 0
    %403 = vmatprep.subr.bf16.mxu0 0
    %404 = vmatpush1.bf16.msra.mxu0 0
    %405 = vmatprep.subr.bf16.mxu0 0
    %406 = vmatpush1.bf16.msra.mxu0 0
    %407 = vmatprep.subr.bf16.mxu0 0
    %408 = vmatpush1.bf16.msra.mxu0 0
    %409 = vmatprep.subr.bf16.mxu0 0
    %410 = vmatpush1.bf16.msra.mxu0 0
    %411 = vmatprep.subr.bf16.mxu0 0
    %412 = vmatpush1.bf16.msra.mxu0 0
    %413 = vmatprep.subr.bf16.mxu0 0
    %414 = vmatpush1.bf16.msra.mxu0 0
    %415 = vmatprep.subr.bf16.mxu0 0
    %416 = vmatpush1.bf16.msra.mxu0 0
    %417 = vmatprep.mubr.bf16.mxu0 0
    %418 = vmatmul.mubr.bf16.gmra.mrb[0].mxu0 %v318
    %v419 = vpop.f32.mrb[0].mxu0
    %v420 = vadd.f32 %v336, %v419
    %v421 = vpop.f32.mrb[0].mxu0
    %v422 = vpop.f32.mrb[0].mxu0
    %v423 = vpop.f32.mrb[0].mxu0
    %424 = vdwg.mxu0
    %v425 = vld [vmem:[#allocation10 + $0x2] ss:$0 sm:$0xff]
    %v426 = vmul.f32 %v425, %v420
    %v427 = vtanh.pop %v426
    %v428 = vmul.f32 %v427, 0.5
    %v429 = vadd.f32 %v428, 0.5
    %v430 = vmul.f32 %v420, %v429
    %v431 = vpack.c.bf16 %v92, %v92
    %s432 = scalar_lea.vmem [#allocation5], 384
    %v433 = vld [vmem:[%s432] sm:$0xf]
    %v434 = vld [vmem:[%s432 + $0x8] sm:$0xf]
    %v435 = vld [vmem:[%s432 + $0x10] sm:$0xf]
    %v436 = vld [vmem:[%s432 + $0x18] sm:$0xf]
    %v437 = vld [vmem:[%s432 + $0x20] sm:$0xf]
    %v438 = vld [vmem:[%s432 + $0x28] sm:$0xf]
    %v439 = vld [vmem:[%s432 + $0x30] sm:$0xf]
    %v440 = vld [vmem:[%s432 + $0x38] sm:$0xf]
    %v441 = vld [vmem:[%s432 + $0x40] sm:$0xf]
    %v442 = vld [vmem:[%s432 + $0x48] sm:$0xf]
    %v443 = vld [vmem:[%s432 + $0x50] sm:$0xf]
    %v444 = vld [vmem:[%s432 + $0x58] sm:$0xf]
    %v445 = vld [vmem:[%s432 + $0x60] sm:$0xf]
    %v446 = vld [vmem:[%s432 + $0x68] sm:$0xf]
    %v447 = vld [vmem:[%s432 + $0x70] sm:$0xf]
    %v448 = vld [vmem:[%s432 + $0x78] sm:$0xf]
    %v449 = vld [vmem:[#allocation8 + $0x3] ss:$0 sm:$0xff]
    %v466 = vunpack.c.l.b16 %v433
    %v467 = vunpack.c.l.b16 %v434
    %v468 = vunpack.c.l.b16 %v435
    %v469 = vunpack.c.l.b16 %v436
    %v470 = vunpack.c.l.b16 %v437
    %v471 = vunpack.c.l.b16 %v438
    %v472 = vunpack.c.l.b16 %v439
    %v473 = vunpack.c.l.b16 %v440
    %v474 = vunpack.c.l.b16 %v441
    %v475 = vunpack.c.l.b16 %v442
    %v476 = vunpack.c.l.b16 %v443
    %v477 = vunpack.c.l.b16 %v444
    %v478 = vunpack.c.l.b16 %v445
    %v479 = vunpack.c.l.b16 %v446
    %v480 = vunpack.c.l.b16 %v447
    %v481 = vunpack.c.l.b16 %v448
    %v482 = vpack.c.b16 %v467, %v466
    %v483 = vpack.c.b16 %v469, %v468
    %v484 = vpack.c.b16 %v471, %v470
    %v485 = vpack.c.b16 %v473, %v472
    %v486 = vpack.c.b16 %v475, %v474
    %v487 = vpack.c.b16 %v477, %v476
    %v488 = vpack.c.b16 %v479, %v478
    %v489 = vpack.c.b16 %v481, %v480
    %498 = vmatprep.subr.bf16.mxu0 0
    %499 = vmatpush1.bf16.msra.mxu0 %v482
    %500 = vmatprep.subr.bf16.mxu0 0
    %501 = vmatpush1.bf16.msra.mxu0 %v483
    %502 = vmatprep.subr.bf16.mxu0 0
    %503 = vmatpush1.bf16.msra.mxu0 %v484
    %504 = vmatprep.subr.bf16.mxu0 0
    %505 = vmatpush1.bf16.msra.mxu0 %v485
    %506 = vmatprep.subr.bf16.mxu0 0
    %507 = vmatpush1.bf16.msra.mxu0 %v486
    %508 = vmatprep.subr.bf16.mxu0 0
    %509 = vmatpush1.bf16.msra.mxu0 %v487
    %510 = vmatprep.subr.bf16.mxu0 0
    %511 = vmatpush1.bf16.msra.mxu0 %v488
    %512 = vmatprep.subr.bf16.mxu0 0
    %513 = vmatpush1.bf16.msra.mxu0 %v489
    %514 = vmatprep.subr.bf16.mxu0 0
    %515 = vmatpush1.bf16.msra.mxu0 0
    %516 = vmatprep.subr.bf16.mxu0 0
    %517 = vmatpush1.bf16.msra.mxu0 0
    %518 = vmatprep.subr.bf16.mxu0 0
    %519 = vmatpush1.bf16.msra.mxu0 0
    %520 = vmatprep.subr.bf16.mxu0 0
    %521 = vmatpush1.bf16.msra.mxu0 0
    %522 = vmatprep.subr.bf16.mxu0 0
    %523 = vmatpush1.bf16.msra.mxu0 0
    %524 = vmatprep.subr.bf16.mxu0 0
    %525 = vmatpush1.bf16.msra.mxu0 0
    %526 = vmatprep.subr.bf16.mxu0 0
    %527 = vmatpush1.bf16.msra.mxu0 0
    %528 = vmatprep.subr.bf16.mxu0 0
    %529 = vmatpush1.bf16.msra.mxu0 0
    %530 = vmatprep.mubr.bf16.mxu0 0
    %531 = vmatmul.mubr.bf16.gmra.mrb[0].mxu0 %v431
    %v532 = vpop.f32.mrb[0].mxu0
    %v533 = vadd.f32 %v449, %v532
    %v534 = vpop.f32.mrb[0].mxu0
    %v535 = vpop.f32.mrb[0].mxu0
    %v536 = vpop.f32.mrb[0].mxu0
    %537 = vdwg.mxu0
    %v538 = vld [vmem:[#allocation10 + $0x3] ss:$0 sm:$0xff]
    %v539 = vmul.f32 %v538, %v533
    %v540 = vtanh.pop %v539
    %v541 = vmul.f32 %v540, 0.5
    %v542 = vadd.f32 %v541, 0.5
    %v543 = vmul.f32 %v533, %v542
    %v544 = vpack.c.bf16 %v543, %v543
    %s545 = scalar_lea.vmem [#allocation5], 512
    %v546 = vld [vmem:[%s545] sm:$0xf]
    %v547 = vld [vmem:[%s545 + $0x8] sm:$0xf]
    %v548 = vld [vmem:[%s545 + $0x10] sm:$0xf]
    %v549 = vld [vmem:[%s545 + $0x18] sm:$0xf]
    %v550 = vld [vmem:[%s545 + $0x20] sm:$0xf]
    %v551 = vld [vmem:[%s545 + $0x28] sm:$0xf]
    %v552 = vld [vmem:[%s545 + $0x30] sm:$0xf]
    %v553 = vld [vmem:[%s545 + $0x38] sm:$0xf]
    %v554 = vld [vmem:[%s545 + $0x40] sm:$0xf]
    %v555 = vld [vmem:[%s545 + $0x48] sm:$0xf]
    %v556 = vld [vmem:[%s545 + $0x50] sm:$0xf]
    %v557 = vld [vmem:[%s545 + $0x58] sm:$0xf]
    %v558 = vld [vmem:[%s545 + $0x60] sm:$0xf]
    %v559 = vld [vmem:[%s545 + $0x68] sm:$0xf]
    %v560 = vld [vmem:[%s545 + $0x70] sm:$0xf]
    %v561 = vld [vmem:[%s545 + $0x78] sm:$0xf]
    %v562 = vld [vmem:[#allocation8 + $0x4] ss:$0 sm:$0xff]
    %v579 = vunpack.c.l.b16 %v546
    %v580 = vunpack.c.l.b16 %v547
    %v581 = vunpack.c.l.b16 %v548
    %v582 = vunpack.c.l.b16 %v549
    %v583 = vunpack.c.l.b16 %v550
    %v584 = vunpack.c.l.b16 %v551
    %v585 = vunpack.c.l.b16 %v552
    %v586 = vunpack.c.l.b16 %v553
    %v587 = vunpack.c.l.b16 %v554
    %v588 = vunpack.c.l.b16 %v555
    %v589 = vunpack.c.l.b16 %v556
    %v590 = vunpack.c.l.b16 %v557
    %v591 = vunpack.c.l.b16 %v558
    %v592 = vunpack.c.l.b16 %v559
    %v593 = vunpack.c.l.b16 %v560
    %v594 = vunpack.c.l.b16 %v561
    %v595 = vpack.c.b16 %v580, %v579
    %v596 = vpack.c.b16 %v582, %v581
    %v597 = vpack.c.b16 %v584, %v583
    %v598 = vpack.c.b16 %v586, %v585
    %v599 = vpack.c.b16 %v588, %v587
    %v600 = vpack.c.b16 %v590, %v589
    %v601 = vpack.c.b16 %v592, %v591
    %v602 = vpack.c.b16 %v594, %v593
    %611 = vmatprep.subr.bf16.mxu0 0
    %612 = vmatpush1.bf16.msra.mxu0 %v595
    %613 = vmatprep.subr.bf16.mxu0 0
    %614 = vmatpush1.bf16.msra.mxu0 %v596
    %615 = vmatprep.subr.bf16.mxu0 0
    %616 = vmatpush1.bf16.msra.mxu0 %v597
    %617 = vmatprep.subr.bf16.mxu0 0
    %618 = vmatpush1.bf16.msra.mxu0 %v598
    %619 = vmatprep.subr.bf16.mxu0 0
    %620 = vmatpush1.bf16.msra.mxu0 %v599
    %621 = vmatprep.subr.bf16.mxu0 0
    %622 = vmatpush1.bf16.msra.mxu0 %v600
    %623 = vmatprep.subr.bf16.mxu0 0
    %624 = vmatpush1.bf16.msra.mxu0 %v601
    %625 = vmatprep.subr.bf16.mxu0 0
    %626 = vmatpush1.bf16.msra.mxu0 %v602
    %627 = vmatprep.subr.bf16.mxu0 0
    %628 = vmatpush1.bf16.msra.mxu0 0
    %629 = vmatprep.subr.bf16.mxu0 0
    %630 = vmatpush1.bf16.msra.mxu0 0
    %631 = vmatprep.subr.bf16.mxu0 0
    %632 = vmatpush1.bf16.msra.mxu0 0
    %633 = vmatprep.subr.bf16.mxu0 0
    %634 = vmatpush1.bf16.msra.mxu0 0
    %635 = vmatprep.subr.bf16.mxu0 0
    %636 = vmatpush1.bf16.msra.mxu0 0
    %637 = vmatprep.subr.bf16.mxu0 0
    %638 = vmatpush1.bf16.msra.mxu0 0
    %639 = vmatprep.subr.bf16.mxu0 0
    %640 = vmatpush1.bf16.msra.mxu0 0
    %641 = vmatprep.subr.bf16.mxu0 0
    %642 = vmatpush1.bf16.msra.mxu0 0
    %643 = vmatprep.mubr.bf16.mxu0 0
    %644 = vmatmul.mubr.bf16.gmra.mrb[0].mxu0 %v544
    %v645 = vpop.f32.mrb[0].mxu0
    %v646 = vadd.f32 %v562, %v645
    %v647 = vpop.f32.mrb[0].mxu0
    %v648 = vpop.f32.mrb[0].mxu0
    %v649 = vpop.f32.mrb[0].mxu0
    %650 = vdwg.mxu0
    %v651 = vld [vmem:[#allocation10 + $0x4] ss:$0 sm:$0xff]
    %v652 = vmul.f32 %v651, %v646
    %v653 = vtanh.pop %v652
    %v654 = vmul.f32 %v653, 0.5
    %v655 = vadd.f32 %v654, 0.5
    %v656 = vmul.f32 %v646, %v655
    %v657 = vpack.c.bf16 %v430, %v430
    %s658 = scalar_lea.vmem [#allocation5], 640
    %v659 = vld [vmem:[%s658] sm:$0xf]
    %v660 = vld [vmem:[%s658 + $0x8] sm:$0xf]
    %v661 = vld [vmem:[%s658 + $0x10] sm:$0xf]
    %v662 = vld [vmem:[%s658 + $0x18] sm:$0xf]
    %v663 = vld [vmem:[%s658 + $0x20] sm:$0xf]
    %v664 = vld [vmem:[%s658 + $0x28] sm:$0xf]
    %v665 = vld [vmem:[%s658 + $0x30] sm:$0xf]
    %v666 = vld [vmem:[%s658 + $0x38] sm:$0xf]
    %v667 = vld [vmem:[%s658 + $0x40] sm:$0xf]
    %v668 = vld [vmem:[%s658 + $0x48] sm:$0xf]
    %v669 = vld [vmem:[%s658 + $0x50] sm:$0xf]
    %v670 = vld [vmem:[%s658 + $0x58] sm:$0xf]
    %v671 = vld [vmem:[%s658 + $0x60] sm:$0xf]
    %v672 = vld [vmem:[%s658 + $0x68] sm:$0xf]
    %v673 = vld [vmem:[%s658 + $0x70] sm:$0xf]
    %v674 = vld [vmem:[%s658 + $0x78] sm:$0xf]
    %v675 = vld [vmem:[#allocation8 + $0x5] ss:$0 sm:$0xff]
    %v692 = vunpack.c.l.b16 %v659
    %v693 = vunpack.c.l.b16 %v660
    %v694 = vunpack.c.l.b16 %v661
    %v695 = vunpack.c.l.b16 %v662
    %v696 = vunpack.c.l.b16 %v663
    %v697 = vunpack.c.l.b16 %v664
    %v698 = vunpack.c.l.b16 %v665
    %v699 = vunpack.c.l.b16 %v666
    %v700 = vunpack.c.l.b16 %v667
    %v701 = vunpack.c.l.b16 %v668
    %v702 = vunpack.c.l.b16 %v669
    %v703 = vunpack.c.l.b16 %v670
    %v704 = vunpack.c.l.b16 %v671
    %v705 = vunpack.c.l.b16 %v672
    %v706 = vunpack.c.l.b16 %v673
    %v707 = vunpack.c.l.b16 %v674
    %v708 = vpack.c.b16 %v693, %v692
    %v709 = vpack.c.b16 %v695, %v694
    %v710 = vpack.c.b16 %v697, %v696
    %v711 = vpack.c.b16 %v699, %v698
    %v712 = vpack.c.b16 %v701, %v700
    %v713 = vpack.c.b16 %v703, %v702
    %v714 = vpack.c.b16 %v705, %v704
    %v715 = vpack.c.b16 %v707, %v706
    %724 = vmatprep.subr.bf16.mxu0 0
    %725 = vmatpush1.bf16.msra.mxu0 %v708
    %726 = vmatprep.subr.bf16.mxu0 0
    %727 = vmatpush1.bf16.msra.mxu0 %v709
    %728 = vmatprep.subr.bf16.mxu0 0
    %729 = vmatpush1.bf16.msra.mxu0 %v710
    %730 = vmatprep.subr.bf16.mxu0 0
    %731 = vmatpush1.bf16.msra.mxu0 %v711
    %732 = vmatprep.subr.bf16.mxu0 0
    %733 = vmatpush1.bf16.msra.mxu0 %v712
    %734 = vmatprep.subr.bf16.mxu0 0
    %735 = vmatpush1.bf16.msra.mxu0 %v713
    %736 = vmatprep.subr.bf16.mxu0 0
    %737 = vmatpush1.bf16.msra.mxu0 %v714
    %738 = vmatprep.subr.bf16.mxu0 0
    %739 = vmatpush1.bf16.msra.mxu0 %v715
    %740 = vmatprep.subr.bf16.mxu0 0
    %741 = vmatpush1.bf16.msra.mxu0 0
    %742 = vmatprep.subr.bf16.mxu0 0
    %743 = vmatpush1.bf16.msra.mxu0 0
    %744 = vmatprep.subr.bf16.mxu0 0
    %745 = vmatpush1.bf16.msra.mxu0 0
    %746 = vmatprep.subr.bf16.mxu0 0
    %747 = vmatpush1.bf16.msra.mxu0 0
    %748 = vmatprep.subr.bf16.mxu0 0
    %749 = vmatpush1.bf16.msra.mxu0 0
    %750 = vmatprep.subr.bf16.mxu0 0
    %751 = vmatpush1.bf16.msra.mxu0 0
    %752 = vmatprep.subr.bf16.mxu0 0
    %753 = vmatpush1.bf16.msra.mxu0 0
    %754 = vmatprep.subr.bf16.mxu0 0
    %755 = vmatpush1.bf16.msra.mxu0 0
    %756 = vmatprep.mubr.bf16.mxu0 0
    %757 = vmatmul.mubr.bf16.gmra.mrb[0].mxu0 %v657
    %v758 = vpop.f32.mrb[0].mxu0
    %v759 = vadd.f32 %v675, %v758
    %v760 = vpop.f32.mrb[0].mxu0
    %v761 = vpop.f32.mrb[0].mxu0
    %v762 = vpop.f32.mrb[0].mxu0
    %763 = vdwg.mxu0
    %v764 = vld [vmem:[#allocation10 + $0x5] ss:$0 sm:$0xff]
    %v765 = vmul.f32 %v764, %v759
    %v766 = vtanh.pop %v765
    %v767 = vmul.f32 %v766, 0.5
    %v768 = vadd.f32 %v767, 0.5
    %v769 = vmul.f32 %v759, %v768
    %v770 = vadd.f32 %v656, %v90
    %v771 = vmul.f32 %v769, %v770
    %v772 = vpack.c.bf16 %v771, %v771
    %s773 = scalar_lea.vmem [#allocation5], 768
    %v774 = vld [vmem:[%s773] sm:$0xff]
    %v775 = vld [vmem:[%s773 + $0x8] sm:$0xff]
    %v776 = vld [vmem:[%s773 + $0x10] sm:$0xff]
    %v777 = vld [vmem:[%s773 + $0x18] sm:$0xff]
    %v778 = vld [vmem:[%s773 + $0x20] sm:$0xff]
    %v779 = vld [vmem:[%s773 + $0x28] sm:$0xff]
    %v780 = vld [vmem:[%s773 + $0x30] sm:$0xff]
    %v781 = vld [vmem:[%s773 + $0x38] sm:$0xff]
    %v782 = vld [vmem:[%s773 + $0x40] sm:$0xff]
    %v783 = vld [vmem:[%s773 + $0x48] sm:$0xff]
    %v784 = vld [vmem:[%s773 + $0x50] sm:$0xff]
    %v785 = vld [vmem:[%s773 + $0x58] sm:$0xff]
    %v786 = vld [vmem:[%s773 + $0x60] sm:$0xff]
    %v787 = vld [vmem:[%s773 + $0x68] sm:$0xff]
    %v788 = vld [vmem:[%s773 + $0x70] sm:$0xff]
    %v789 = vld [vmem:[%s773 + $0x78] sm:$0xff]
    %s790 = scalar_lea.vmem [#allocation8], 6
    %v791 = vld [vmem:[%s790] ss:$8 sm:$0x3]
    %v793 = vlaneseq
    %v794 = vshrl.u32 %v793, 7
    %v795 = vsub.s32 0, %v794
    %v796 = vrot.slane %v791, %v795
    %v797 = vlaneseq
    %v798 = vshrl.u32 %v797, 7
    %v799 = vsub.s32 1, %v798
    %v800 = vrot.slane %v791, %v799
    %v819 = vunpack.c.l.b16 %v774
    %v820 = vunpack.c.h.b16 %v774
    %v821 = vunpack.c.l.b16 %v775
    %v822 = vunpack.c.h.b16 %v775
    %v823 = vunpack.c.l.b16 %v776
    %v824 = vunpack.c.h.b16 %v776
    %v825 = vunpack.c.l.b16 %v777
    %v826 = vunpack.c.h.b16 %v777
    %v827 = vunpack.c.l.b16 %v778
    %v828 = vunpack.c.h.b16 %v778
    %v829 = vunpack.c.l.b16 %v779
    %v830 = vunpack.c.h.b16 %v779
    %v831 = vunpack.c.l.b16 %v780
    %v832 = vunpack.c.h.b16 %v780
    %v833 = vunpack.c.l.b16 %v781
    %v834 = vunpack.c.h.b16 %v781
    %v835 = vunpack.c.l.b16 %v782
    %v836 = vunpack.c.h.b16 %v782
    %v837 = vunpack.c.l.b16 %v783
    %v838 = vunpack.c.h.b16 %v783
    %v839 = vunpack.c.l.b16 %v784
    %v840 = vunpack.c.h.b16 %v784
    %v841 = vunpack.c.l.b16 %v785
    %v842 = vunpack.c.h.b16 %v785
    %v843 = vunpack.c.l.b16 %v786
    %v844 = vunpack.c.h.b16 %v786
    %v845 = vunpack.c.l.b16 %v787
    %v846 = vunpack.c.h.b16 %v787
    %v847 = vunpack.c.l.b16 %v788
    %v848 = vunpack.c.h.b16 %v788
    %v849 = vunpack.c.l.b16 %v789
    %v850 = vunpack.c.h.b16 %v789
    %v851 = vpack.c.b16 %v821, %v819
    %v852 = vpack.c.b16 %v822, %v820
    %v853 = vpack.c.b16 %v825, %v823
    %v854 = vpack.c.b16 %v826, %v824
    %v855 = vpack.c.b16 %v829, %v827
    %v856 = vpack.c.b16 %v830, %v828
    %v857 = vpack.c.b16 %v833, %v831
    %v858 = vpack.c.b16 %v834, %v832
    %v859 = vpack.c.b16 %v837, %v835
    %v860 = vpack.c.b16 %v838, %v836
    %v861 = vpack.c.b16 %v841, %v839
    %v862 = vpack.c.b16 %v842, %v840
    %v863 = vpack.c.b16 %v845, %v843
    %v864 = vpack.c.b16 %v846, %v844
    %v865 = vpack.c.b16 %v849, %v847
    %v866 = vpack.c.b16 %v850, %v848
    %883 = vmatprep.subr.bf16.mxu0 %v852
    %884 = vmatpush1.bf16.msra.mxu0 %v851
    %885 = vmatprep.subr.bf16.mxu0 %v854
    %886 = vmatpush1.bf16.msra.mxu0 %v853
    %887 = vmatprep.subr.bf16.mxu0 %v856
    %888 = vmatpush1.bf16.msra.mxu0 %v855
    %889 = vmatprep.subr.bf16.mxu0 %v858
    %890 = vmatpush1.bf16.msra.mxu0 %v857
    %891 = vmatprep.subr.bf16.mxu0 %v860
    %892 = vmatpush1.bf16.msra.mxu0 %v859
    %893 = vmatprep.subr.bf16.mxu0 %v862
    %894 = vmatpush1.bf16.msra.mxu0 %v861
    %895 = vmatprep.subr.bf16.mxu0 %v864
    %896 = vmatpush1.bf16.msra.mxu0 %v863
    %897 = vmatprep.subr.bf16.mxu0 %v866
    %898 = vmatpush1.bf16.msra.mxu0 %v865
    %899 = vmatprep.subr.bf16.mxu0 0
    %900 = vmatpush1.bf16.msra.mxu0 0
    %901 = vmatprep.subr.bf16.mxu0 0
    %902 = vmatpush1.bf16.msra.mxu0 0
    %903 = vmatprep.subr.bf16.mxu0 0
    %904 = vmatpush1.bf16.msra.mxu0 0
    %905 = vmatprep.subr.bf16.mxu0 0
    %906 = vmatpush1.bf16.msra.mxu0 0
    %907 = vmatprep.subr.bf16.mxu0 0
    %908 = vmatpush1.bf16.msra.mxu0 0
    %909 = vmatprep.subr.bf16.mxu0 0
    %910 = vmatpush1.bf16.msra.mxu0 0
    %911 = vmatprep.subr.bf16.mxu0 0
    %912 = vmatpush1.bf16.msra.mxu0 0
    %913 = vmatprep.subr.bf16.mxu0 0
    %914 = vmatpush1.bf16.msra.mxu0 0
    %915 = vmatprep.mubr.bf16.mxu0 0
    %916 = vmatmul.mubr.bf16.gmra.mrb[0].mxu0 %v772
    %v917 = vpop.f32.mrb[0].mxu0
    %v918 = vadd.f32 %v796, %v917
    %v919 = vpop.f32.mrb[0].mxu0
    %v920 = vadd.f32 %v800, %v919
    %v921 = vpop.f32.mrb[0].mxu0
    %v922 = vpop.f32.mrb[0].mxu0
    %923 = vdwg.mxu0
    %s924 = scalar_lea.vmem [#allocation10], 6
    %v925 = vld [vmem:[%s924] ss:$8 sm:$0x3]
    %v927 = vlaneseq
    %v928 = vshrl.u32 %v927, 7
    %v929 = vsub.s32 0, %v928
    %v930 = vrot.slane %v925, %v929
    %v931 = vlaneseq
    %v932 = vshrl.u32 %v931, 7
    %v933 = vsub.s32 1, %v932
    %v934 = vrot.slane %v925, %v933
    %v937 = vmul.f32 %v930, %v918
    %v938 = vmul.f32 %v934, %v920
    %v939 = vtanh.pop %v937
    %v940 = vtanh.pop %v938
    %v941 = vmul.f32 %v939, 0.5
    %v942 = vmul.f32 %v940, 0.5
    %v943 = vadd.f32 %v941, 0.5
    %v944 = vadd.f32 %v942, 0.5
    %v945 = vmul.f32 %v918, %v943
    %v946 = vmul.f32 %v920, %v944
    %v947 = vpack.c.bf16 %v945, %v945
    %v948 = vpack.c.bf16 %v946, %v946
    %v949 = vld [vmem:[#allocation7] sm:$0xff]
    %v950 = vld [vmem:[#allocation7 + $0x8] sm:$0xff]
    %v951 = vld [vmem:[#allocation7 + $0x10] sm:$0xff]
    %v952 = vld [vmem:[#allocation7 + $0x18] sm:$0xf]
    %v953 = vld [vmem:[#allocation7 + $0x1c] sm:$0xff]
    %v954 = vld [vmem:[#allocation7 + $0x24] sm:$0xff]
    %v955 = vld [vmem:[#allocation7 + $0x2c] sm:$0xff]
    %v956 = vld [vmem:[#allocation7 + $0x34] sm:$0xf]
    %v957 = vld [vmem:[#allocation7 + $0x38] sm:$0xff]
    %v958 = vld [vmem:[#allocation7 + $0x40] sm:$0xff]
    %v959 = vld [vmem:[#allocation7 + $0x48] sm:$0xff]
    %v960 = vld [vmem:[#allocation7 + $0x50] sm:$0xf]
    %v961 = vld [vmem:[#allocation7 + $0x54] sm:$0xff]
    %v962 = vld [vmem:[#allocation7 + $0x5c] sm:$0xff]
    %v963 = vld [vmem:[#allocation7 + $0x64] sm:$0xff]
    %v964 = vld [vmem:[#allocation7 + $0x6c] sm:$0xf]
    %v965 = vld [vmem:[#allocation7 + $0x70] sm:$0xff]
    %v966 = vld [vmem:[#allocation7 + $0x78] sm:$0xff]
    %v967 = vld [vmem:[#allocation7 + $0x80] sm:$0xff]
    %v968 = vld [vmem:[#allocation7 + $0x88] sm:$0xf]
    %v969 = vld [vmem:[#allocation7 + $0x8c] sm:$0xff]
    %v970 = vld [vmem:[#allocation7 + $0x94] sm:$0xff]
    %v971 = vld [vmem:[#allocation7 + $0x9c] sm:$0xff]
    %v972 = vld [vmem:[#allocation7 + $0xa4] sm:$0xf]
    %v973 = vld [vmem:[#allocation7 + $0xa8] sm:$0xff]
    %v974 = vld [vmem:[#allocation7 + $0xb0] sm:$0xff]
    %v975 = vld [vmem:[#allocation7 + $0xb8] sm:$0xff]
    %v976 = vld [vmem:[#allocation7 + $0xc0] sm:$0xf]
    %v977 = vld [vmem:[#allocation7 + $0xc4] sm:$0xff]
    %v978 = vld [vmem:[#allocation7 + $0xcc] sm:$0xff]
    %v979 = vld [vmem:[#allocation7 + $0xd4] sm:$0xff]
    %v980 = vld [vmem:[#allocation7 + $0xdc] sm:$0xf]
    %v981 = vld [vmem:[#allocation7 + $0xe0] sm:$0xff]
    %v982 = vld [vmem:[#allocation7 + $0xe8] sm:$0xff]
    %v983 = vld [vmem:[#allocation7 + $0xf0] sm:$0xff]
    %v984 = vld [vmem:[#allocation7 + $0xf8] sm:$0xf]
    %v985 = vld [vmem:[#allocation7 + $0xfc] sm:$0xff]
    %v986 = vld [vmem:[#allocation7 + $0x104] sm:$0xff]
    %v987 = vld [vmem:[#allocation7 + $0x10c] sm:$0xff]
    %v988 = vld [vmem:[#allocation7 + $0x114] sm:$0xf]
    %v989 = vld [vmem:[#allocation7 + $0x118] sm:$0xff]
    %v990 = vld [vmem:[#allocation7 + $0x120] sm:$0xff]
    %v991 = vld [vmem:[#allocation7 + $0x128] sm:$0xff]
    %v992 = vld [vmem:[#allocation7 + $0x130] sm:$0xf]
    %v993 = vld [vmem:[#allocation7 + $0x134] sm:$0xff]
    %v994 = vld [vmem:[#allocation7 + $0x13c] sm:$0xff]
    %v995 = vld [vmem:[#allocation7 + $0x144] sm:$0xff]
    %v996 = vld [vmem:[#allocation7 + $0x14c] sm:$0xf]
    %v997 = vld [vmem:[#allocation7 + $0x150] sm:$0xff]
    %v998 = vld [vmem:[#allocation7 + $0x158] sm:$0xff]
    %v999 = vld [vmem:[#allocation7 + $0x160] sm:$0xff]
    %v1000 = vld [vmem:[#allocation7 + $0x168] sm:$0xf]
    %v1001 = vld [vmem:[#allocation7 + $0x16c] sm:$0xff]
    %v1002 = vld [vmem:[#allocation7 + $0x174] sm:$0xff]
    %v1003 = vld [vmem:[#allocation7 + $0x17c] sm:$0xff]
    %v1004 = vld [vmem:[#allocation7 + $0x184] sm:$0xf]
    %v1005 = vld [vmem:[#allocation7 + $0x188] sm:$0xff]
    %v1006 = vld [vmem:[#allocation7 + $0x190] sm:$0xff]
    %v1007 = vld [vmem:[#allocation7 + $0x198] sm:$0xff]
    %v1008 = vld [vmem:[#allocation7 + $0x1a0] sm:$0xf]
    %v1009 = vld [vmem:[#allocation7 + $0x1a4] sm:$0xff]
    %v1010 = vld [vmem:[#allocation7 + $0x1ac] sm:$0xff]
    %v1011 = vld [vmem:[#allocation7 + $0x1b4] sm:$0xff]
    %v1012 = vld [vmem:[#allocation7 + $0x1bc] sm:$0xf]
    %v1013 = vld [vmem:[#allocation7 + $0x1c0] sm:$0xff]
    %v1014 = vld [vmem:[#allocation7 + $0x1c8] sm:$0xff]
    %v1015 = vld [vmem:[#allocation7 + $0x1d0] sm:$0xff]
    %v1016 = vld [vmem:[#allocation7 + $0x1d8] sm:$0xf]
    %v1017 = vld [vmem:[#allocation7 + $0x1dc] sm:$0xff]
    %v1018 = vld [vmem:[#allocation7 + $0x1e4] sm:$0xff]
    %v1019 = vld [vmem:[#allocation7 + $0x1ec] sm:$0xff]
    %v1020 = vld [vmem:[#allocation7 + $0x1f4] sm:$0xf]
    %v1021 = vld [vmem:[#allocation7 + $0x1f8] sm:$0xff]
    %v1022 = vld [vmem:[#allocation7 + $0x200] sm:$0xff]
    %v1023 = vld [vmem:[#allocation7 + $0x208] sm:$0xff]
    %v1024 = vld [vmem:[#allocation7 + $0x210] sm:$0xf]
    %v1025 = vld [vmem:[#allocation7 + $0x214] sm:$0xff]
    %v1026 = vld [vmem:[#allocation7 + $0x21c] sm:$0xff]
    %v1027 = vld [vmem:[#allocation7 + $0x224] sm:$0xff]
    %v1028 = vld [vmem:[#allocation7 + $0x22c] sm:$0xf]
    %v1029 = vld [vmem:[#allocation7 + $0x230] sm:$0xff]
    %v1030 = vld [vmem:[#allocation7 + $0x238] sm:$0xff]
    %v1031 = vld [vmem:[#allocation7 + $0x240] sm:$0xff]
    %v1032 = vld [vmem:[#allocation7 + $0x248] sm:$0xf]
    %v1033 = vld [vmem:[#allocation7 + $0x24c] sm:$0xff]
    %v1034 = vld [vmem:[#allocation7 + $0x254] sm:$0xff]
    %v1035 = vld [vmem:[#allocation7 + $0x25c] sm:$0xff]
    %v1036 = vld [vmem:[#allocation7 + $0x264] sm:$0xf]
    %v1037 = vld [vmem:[#allocation7 + $0x268] sm:$0xff]
    %v1038 = vld [vmem:[#allocation7 + $0x270] sm:$0xff]
    %v1039 = vld [vmem:[#allocation7 + $0x278] sm:$0xff]
    %v1040 = vld [vmem:[#allocation7 + $0x280] sm:$0xf]
    %v1041 = vld [vmem:[#allocation7 + $0x284] sm:$0xff]
    %v1042 = vld [vmem:[#allocation7 + $0x28c] sm:$0xff]
    %v1043 = vld [vmem:[#allocation7 + $0x294] sm:$0xff]
    %v1044 = vld [vmem:[#allocation7 + $0x29c] sm:$0xf]
    %v1045 = vld [vmem:[#allocation7 + $0x2a0] sm:$0xff]
    %v1046 = vld [vmem:[#allocation7 + $0x2a8] sm:$0xff]
    %v1047 = vld [vmem:[#allocation7 + $0x2b0] sm:$0xff]
    %v1048 = vld [vmem:[#allocation7 + $0x2b8] sm:$0xf]
    %v1049 = vld [vmem:[#allocation7 + $0x2bc] sm:$0xff]
    %v1050 = vld [vmem:[#allocation7 + $0x2c4] sm:$0xff]
    %v1051 = vld [vmem:[#allocation7 + $0x2cc] sm:$0xff]
    %v1052 = vld [vmem:[#allocation7 + $0x2d4] sm:$0xf]
    %v1053 = vld [vmem:[#allocation7 + $0x2d8] sm:$0xff]
    %v1054 = vld [vmem:[#allocation7 + $0x2e0] sm:$0xff]
    %v1055 = vld [vmem:[#allocation7 + $0x2e8] sm:$0xff]
    %v1056 = vld [vmem:[#allocation7 + $0x2f0] sm:$0xf]
    %v1057 = vld [vmem:[#allocation7 + $0x2f4] sm:$0xff]
    %v1058 = vld [vmem:[#allocation7 + $0x2fc] sm:$0xff]
    %v1059 = vld [vmem:[#allocation7 + $0x304] sm:$0xff]
    %v1060 = vld [vmem:[#allocation7 + $0x30c] sm:$0xf]
    %v1061 = vld [vmem:[#allocation7 + $0x310] sm:$0xff]
    %v1062 = vld [vmem:[#allocation7 + $0x318] sm:$0xff]
    %v1063 = vld [vmem:[#allocation7 + $0x320] sm:$0xff]
    %v1064 = vld [vmem:[#allocation7 + $0x328] sm:$0xf]
    %v1065 = vld [vmem:[#allocation7 + $0x32c] sm:$0xff]
    %v1066 = vld [vmem:[#allocation7 + $0x334] sm:$0xff]
    %v1067 = vld [vmem:[#allocation7 + $0x33c] sm:$0xff]
    %v1068 = vld [vmem:[#allocation7 + $0x344] sm:$0xf]
    %v1069 = vld [vmem:[#allocation7 + $0x348] sm:$0xff]
    %v1070 = vld [vmem:[#allocation7 + $0x350] sm:$0xff]
    %v1071 = vld [vmem:[#allocation7 + $0x358] sm:$0xff]
    %v1072 = vld [vmem:[#allocation7 + $0x360] sm:$0xf]
    %v1073 = vld [vmem:[#allocation7 + $0x364] sm:$0xff]
    %v1074 = vld [vmem:[#allocation7 + $0x36c] sm:$0xff]
    %v1075 = vld [vmem:[#allocation7 + $0x374] sm:$0xff]
    %v1076 = vld [vmem:[#allocation7 + $0x37c] sm:$0xf]
    %s1077 = scalar_lea.vmem [#allocation8], 7
    %v1078 = vld [vmem:[%s1077] ss:$8 sm:$0xf]
    %v1079 = vld [vmem:[%s1077] ss:$8 sm:$0xf0]
    %v1080 = vor.u32 %v1078, %v1079
    %v1082 = vlaneseq
    %v1083 = vshrl.u32 %v1082, 7
    %v1084 = vsub.s32 0, %v1083
    %v1085 = vrot.slane %v1080, %v1084
    %v1086 = vlaneseq
    %v1087 = vshrl.u32 %v1086, 7
    %v1088 = vsub.s32 1, %v1087
    %v1089 = vrot.slane %v1080, %v1088
    %v1090 = vlaneseq
    %v1091 = vshrl.u32 %v1090, 7
    %v1092 = vsub.s32 2, %v1091
    %v1093 = vrot.slane %v1080, %v1092
    %v1094 = vlaneseq
    %v1095 = vshrl.u32 %v1094, 7
    %v1096 = vsub.s32 3, %v1095
    %v1097 = vrot.slane %v1080, %v1096
    %v1098 = vlaneseq
    %v1099 = vshrl.u32 %v1098, 7
    %v1100 = vsub.s32 4, %v1099
    %v1101 = vrot.slane %v1080, %v1100
    %v1102 = vlaneseq
    %v1103 = vshrl.u32 %v1102, 7
    %v1104 = vsub.s32 5, %v1103
    %v1105 = vrot.slane %v1080, %v1104
    %v1106 = vlaneseq
    %v1107 = vshrl.u32 %v1106, 7
    %v1108 = vsub.s32 6, %v1107
    %v1109 = vrot.slane %v1080, %v1108
    %v1245 = vunpack.c.l.b16 %v949
    %v1246 = vunpack.c.h.b16 %v949
    %v1247 = vunpack.c.l.b16 %v950
    %v1248 = vunpack.c.h.b16 %v950
    %v1249 = vunpack.c.l.b16 %v951
    %v1250 = vunpack.c.h.b16 %v951
    %v1251 = vunpack.c.l.b16 %v952
    %v1252 = vunpack.c.l.b16 %v953
    %v1253 = vunpack.c.h.b16 %v953
    %v1254 = vunpack.c.l.b16 %v954
    %v1255 = vunpack.c.h.b16 %v954
    %v1256 = vunpack.c.l.b16 %v955
    %v1257 = vunpack.c.h.b16 %v955
    %v1258 = vunpack.c.l.b16 %v956
    %v1259 = vunpack.c.l.b16 %v957
    %v1260 = vunpack.c.h.b16 %v957
    %v1261 = vunpack.c.l.b16 %v958
    %v1262 = vunpack.c.h.b16 %v958
    %v1263 = vunpack.c.l.b16 %v959
    %v1264 = vunpack.c.h.b16 %v959
    %v1265 = vunpack.c.l.b16 %v960
    %v1266 = vunpack.c.l.b16 %v961
    %v1267 = vunpack.c.h.b16 %v961
    %v1268 = vunpack.c.l.b16 %v962
    %v1269 = vunpack.c.h.b16 %v962
    %v1270 = vunpack.c.l.b16 %v963
    %v1271 = vunpack.c.h.b16 %v963
    %v1272 = vunpack.c.l.b16 %v964
    %v1273 = vunpack.c.l.b16 %v965
    %v1274 = vunpack.c.h.b16 %v965
    %v1275 = vunpack.c.l.b16 %v966
    %v1276 = vunpack.c.h.b16 %v966
    %v1277 = vunpack.c.l.b16 %v967
    %v1278 = vunpack.c.h.b16 %v967
    %v1279 = vunpack.c.l.b16 %v968
    %v1280 = vunpack.c.l.b16 %v969
    %v1281 = vunpack.c.h.b16 %v969
    %v1282 = vunpack.c.l.b16 %v970
    %v1283 = vunpack.c.h.b16 %v970
    %v1284 = vunpack.c.l.b16 %v971
    %v1285 = vunpack.c.h.b16 %v971
    %v1286 = vunpack.c.l.b16 %v972
    %v1287 = vunpack.c.l.b16 %v973
    %v1288 = vunpack.c.h.b16 %v973
    %v1289 = vunpack.c.l.b16 %v974
    %v1290 = vunpack.c.h.b16 %v974
    %v1291 = vunpack.c.l.b16 %v975
    %v1292 = vunpack.c.h.b16 %v975
    %v1293 = vunpack.c.l.b16 %v976
    %v1294 = vunpack.c.l.b16 %v977
    %v1295 = vunpack.c.h.b16 %v977
    %v1296 = vunpack.c.l.b16 %v978
    %v1297 = vunpack.c.h.b16 %v978
    %v1298 = vunpack.c.l.b16 %v979
    %v1299 = vunpack.c.h.b16 %v979
    %v1300 = vunpack.c.l.b16 %v980
    %v1301 = vunpack.c.l.b16 %v981
    %v1302 = vunpack.c.h.b16 %v981
    %v1303 = vunpack.c.l.b16 %v982
    %v1304 = vunpack.c.h.b16 %v982
    %v1305 = vunpack.c.l.b16 %v983
    %v1306 = vunpack.c.h.b16 %v983
    %v1307 = vunpack.c.l.b16 %v984
    %v1308 = vunpack.c.l.b16 %v985
    %v1309 = vunpack.c.h.b16 %v985
    %v1310 = vunpack.c.l.b16 %v986
    %v1311 = vunpack.c.h.b16 %v986
    %v1312 = vunpack.c.l.b16 %v987
    %v1313 = vunpack.c.h.b16 %v987
    %v1314 = vunpack.c.l.b16 %v988
    %v1315 = vunpack.c.l.b16 %v989
    %v1316 = vunpack.c.h.b16 %v989
    %v1317 = vunpack.c.l.b16 %v990
    %v1318 = vunpack.c.h.b16 %v990
    %v1319 = vunpack.c.l.b16 %v991
    %v1320 = vunpack.c.h.b16 %v991
    %v1321 = vunpack.c.l.b16 %v992
    %v1322 = vunpack.c.l.b16 %v993
    %v1323 = vunpack.c.h.b16 %v993
    %v1324 = vunpack.c.l.b16 %v994
    %v1325 = vunpack.c.h.b16 %v994
    %v1326 = vunpack.c.l.b16 %v995
    %v1327 = vunpack.c.h.b16 %v995
    %v1328 = vunpack.c.l.b16 %v996
    %v1329 = vunpack.c.l.b16 %v997
    %v1330 = vunpack.c.h.b16 %v997
    %v1331 = vunpack.c.l.b16 %v998
    %v1332 = vunpack.c.h.b16 %v998
    %v1333 = vunpack.c.l.b16 %v999
    %v1334 = vunpack.c.h.b16 %v999
    %v1335 = vunpack.c.l.b16 %v1000
    %v1336 = vunpack.c.l.b16 %v1001
    %v1337 = vunpack.c.h.b16 %v1001
    %v1338 = vunpack.c.l.b16 %v1002
    %v1339 = vunpack.c.h.b16 %v1002
    %v1340 = vunpack.c.l.b16 %v1003
    %v1341 = vunpack.c.h.b16 %v1003
    %v1342 = vunpack.c.l.b16 %v1004
    %v1343 = vunpack.c.l.b16 %v1005
    %v1344 = vunpack.c.h.b16 %v1005
    %v1345 = vunpack.c.l.b16 %v1006
    %v1346 = vunpack.c.h.b16 %v1006
    %v1347 = vunpack.c.l.b16 %v1007
    %v1348 = vunpack.c.h.b16 %v1007
    %v1349 = vunpack.c.l.b16 %v1008
    %v1350 = vunpack.c.l.b16 %v1009
    %v1351 = vunpack.c.h.b16 %v1009
    %v1352 = vunpack.c.l.b16 %v1010
    %v1353 = vunpack.c.h.b16 %v1010
    %v1354 = vunpack.c.l.b16 %v1011
    %v1355 = vunpack.c.h.b16 %v1011
    %v1356 = vunpack.c.l.b16 %v1012
    %v1357 = vunpack.c.l.b16 %v1013
    %v1358 = vunpack.c.h.b16 %v1013
    %v1359 = vunpack.c.l.b16 %v1014
    %v1360 = vunpack.c.h.b16 %v1014
    %v1361 = vunpack.c.l.b16 %v1015
    %v1362 = vunpack.c.h.b16 %v1015
    %v1363 = vunpack.c.l.b16 %v1016
    %v1364 = vunpack.c.l.b16 %v1017
    %v1365 = vunpack.c.h.b16 %v1017
    %v1366 = vunpack.c.l.b16 %v1018
    %v1367 = vunpack.c.h.b16 %v1018
    %v1368 = vunpack.c.l.b16 %v1019
    %v1369 = vunpack.c.h.b16 %v1019
    %v1370 = vunpack.c.l.b16 %v1020
    %v1371 = vunpack.c.l.b16 %v1021
    %v1372 = vunpack.c.h.b16 %v1021
    %v1373 = vunpack.c.l.b16 %v1022
    %v1374 = vunpack.c.h.b16 %v1022
    %v1375 = vunpack.c.l.b16 %v1023
    %v1376 = vunpack.c.h.b16 %v1023
    %v1377 = vunpack.c.l.b16 %v1024
    %v1378 = vunpack.c.l.b16 %v1025
    %v1379 = vunpack.c.h.b16 %v1025
    %v1380 = vunpack.c.l.b16 %v1026
    %v1381 = vunpack.c.h.b16 %v1026
    %v1382 = vunpack.c.l.b16 %v1027
    %v1383 = vunpack.c.h.b16 %v1027
    %v1384 = vunpack.c.l.b16 %v1028
    %v1385 = vunpack.c.l.b16 %v1029
    %v1386 = vunpack.c.h.b16 %v1029
    %v1387 = vunpack.c.l.b16 %v1030
    %v1388 = vunpack.c.h.b16 %v1030
    %v1389 = vunpack.c.l.b16 %v1031
    %v1390 = vunpack.c.h.b16 %v1031
    %v1391 = vunpack.c.l.b16 %v1032
    %v1392 = vunpack.c.l.b16 %v1033
    %v1393 = vunpack.c.h.b16 %v1033
    %v1394 = vunpack.c.l.b16 %v1034
    %v1395 = vunpack.c.h.b16 %v1034
    %v1396 = vunpack.c.l.b16 %v1035
    %v1397 = vunpack.c.h.b16 %v1035
    %v1398 = vunpack.c.l.b16 %v1036
    %v1399 = vunpack.c.l.b16 %v1037
    %v1400 = vunpack.c.h.b16 %v1037
    %v1401 = vunpack.c.l.b16 %v1038
    %v1402 = vunpack.c.h.b16 %v1038
    %v1403 = vunpack.c.l.b16 %v1039
    %v1404 = vunpack.c.h.b16 %v1039
    %v1405 = vunpack.c.l.b16 %v1040
    %v1406 = vunpack.c.l.b16 %v1041
    %v1407 = vunpack.c.h.b16 %v1041
    %v1408 = vunpack.c.l.b16 %v1042
    %v1409 = vunpack.c.h.b16 %v1042
    %v1410 = vunpack.c.l.b16 %v1043
    %v1411 = vunpack.c.h.b16 %v1043
    %v1412 = vunpack.c.l.b16 %v1044
    %v1413 = vunpack.c.l.b16 %v1045
    %v1414 = vunpack.c.h.b16 %v1045
    %v1415 = vunpack.c.l.b16 %v1046
    %v1416 = vunpack.c.h.b16 %v1046
    %v1417 = vunpack.c.l.b16 %v1047
    %v1418 = vunpack.c.h.b16 %v1047
    %v1419 = vunpack.c.l.b16 %v1048
    %v1420 = vunpack.c.l.b16 %v1049
    %v1421 = vunpack.c.h.b16 %v1049
    %v1422 = vunpack.c.l.b16 %v1050
    %v1423 = vunpack.c.h.b16 %v1050
    %v1424 = vunpack.c.l.b16 %v1051
    %v1425 = vunpack.c.h.b16 %v1051
    %v1426 = vunpack.c.l.b16 %v1052
    %v1427 = vunpack.c.l.b16 %v1053
    %v1428 = vunpack.c.h.b16 %v1053
    %v1429 = vunpack.c.l.b16 %v1054
    %v1430 = vunpack.c.h.b16 %v1054
    %v1431 = vunpack.c.l.b16 %v1055
    %v1432 = vunpack.c.h.b16 %v1055
    %v1433 = vunpack.c.l.b16 %v1056
    %v1434 = vunpack.c.l.b16 %v1057
    %v1435 = vunpack.c.h.b16 %v1057
    %v1436 = vunpack.c.l.b16 %v1058
    %v1437 = vunpack.c.h.b16 %v1058
    %v1438 = vunpack.c.l.b16 %v1059
    %v1439 = vunpack.c.h.b16 %v1059
    %v1440 = vunpack.c.l.b16 %v1060
    %v1441 = vunpack.c.l.b16 %v1061
    %v1442 = vunpack.c.h.b16 %v1061
    %v1443 = vunpack.c.l.b16 %v1062
    %v1444 = vunpack.c.h.b16 %v1062
    %v1445 = vunpack.c.l.b16 %v1063
    %v1446 = vunpack.c.h.b16 %v1063
    %v1447 = vunpack.c.l.b16 %v1064
    %v1448 = vunpack.c.l.b16 %v1065
    %v1449 = vunpack.c.h.b16 %v1065
    %v1450 = vunpack.c.l.b16 %v1066
    %v1451 = vunpack.c.h.b16 %v1066
    %v1452 = vunpack.c.l.b16 %v1067
    %v1453 = vunpack.c.h.b16 %v1067
    %v1454 = vunpack.c.l.b16 %v1068
    %v1455 = vunpack.c.l.b16 %v1069
    %v1456 = vunpack.c.h.b16 %v1069
    %v1457 = vunpack.c.l.b16 %v1070
    %v1458 = vunpack.c.h.b16 %v1070
    %v1459 = vunpack.c.l.b16 %v1071
    %v1460 = vunpack.c.h.b16 %v1071
    %v1461 = vunpack.c.l.b16 %v1072
    %v1462 = vunpack.c.l.b16 %v1073
    %v1463 = vunpack.c.h.b16 %v1073
    %v1464 = vunpack.c.l.b16 %v1074
    %v1465 = vunpack.c.h.b16 %v1074
    %v1466 = vunpack.c.l.b16 %v1075
    %v1467 = vunpack.c.h.b16 %v1075
    %v1468 = vunpack.c.l.b16 %v1076
    %v1469 = vpack.c.b16 %v1252, %v1245
    %v1470 = vpack.c.b16 %v1253, %v1246
    %v1471 = vpack.c.b16 %v1254, %v1247
    %v1472 = vpack.c.b16 %v1255, %v1248
    %v1473 = vpack.c.b16 %v1256, %v1249
    %v1474 = vpack.c.b16 %v1257, %v1250
    %v1475 = vpack.c.b16 %v1258, %v1251
    %v1476 = vpack.c.b16 %v1266, %v1259
    %v1477 = vpack.c.b16 %v1267, %v1260
    %v1478 = vpack.c.b16 %v1268, %v1261
    %v1479 = vpack.c.b16 %v1269, %v1262
    %v1480 = vpack.c.b16 %v1270, %v1263
    %v1481 = vpack.c.b16 %v1271, %v1264
    %v1482 = vpack.c.b16 %v1272, %v1265
    %v1483 = vpack.c.b16 %v1280, %v1273
    %v1484 = vpack.c.b16 %v1281, %v1274
    %v1485 = vpack.c.b16 %v1282, %v1275
    %v1486 = vpack.c.b16 %v1283, %v1276
    %v1487 = vpack.c.b16 %v1284, %v1277
    %v1488 = vpack.c.b16 %v1285, %v1278
    %v1489 = vpack.c.b16 %v1286, %v1279
    %v1490 = vpack.c.b16 %v1294, %v1287
    %v1491 = vpack.c.b16 %v1295, %v1288
    %v1492 = vpack.c.b16 %v1296, %v1289
    %v1493 = vpack.c.b16 %v1297, %v1290
    %v1494 = vpack.c.b16 %v1298, %v1291
    %v1495 = vpack.c.b16 %v1299, %v1292
    %v1496 = vpack.c.b16 %v1300, %v1293
    %v1497 = vpack.c.b16 %v1308, %v1301
    %v1498 = vpack.c.b16 %v1309, %v1302
    %v1499 = vpack.c.b16 %v1310, %v1303
    %v1500 = vpack.c.b16 %v1311, %v1304
    %v1501 = vpack.c.b16 %v1312, %v1305
    %v1502 = vpack.c.b16 %v1313, %v1306
    %v1503 = vpack.c.b16 %v1314, %v1307
    %v1504 = vpack.c.b16 %v1322, %v1315
    %v1505 = vpack.c.b16 %v1323, %v1316
    %v1506 = vpack.c.b16 %v1324, %v1317
    %v1507 = vpack.c.b16 %v1325, %v1318
    %v1508 = vpack.c.b16 %v1326, %v1319
    %v1509 = vpack.c.b16 %v1327, %v1320
    %v1510 = vpack.c.b16 %v1328, %v1321
    %v1511 = vpack.c.b16 %v1336, %v1329
    %v1512 = vpack.c.b16 %v1337, %v1330
    %v1513 = vpack.c.b16 %v1338, %v1331
    %v1514 = vpack.c.b16 %v1339, %v1332
    %v1515 = vpack.c.b16 %v1340, %v1333
    %v1516 = vpack.c.b16 %v1341, %v1334
    %v1517 = vpack.c.b16 %v1342, %v1335
    %v1518 = vpack.c.b16 %v1350, %v1343
    %v1519 = vpack.c.b16 %v1351, %v1344
    %v1520 = vpack.c.b16 %v1352, %v1345
    %v1521 = vpack.c.b16 %v1353, %v1346
    %v1522 = vpack.c.b16 %v1354, %v1347
    %v1523 = vpack.c.b16 %v1355, %v1348
    %v1524 = vpack.c.b16 %v1356, %v1349
    %v1525 = vpack.c.b16 %v1364, %v1357
    %v1526 = vpack.c.b16 %v1365, %v1358
    %v1527 = vpack.c.b16 %v1366, %v1359
    %v1528 = vpack.c.b16 %v1367, %v1360
    %v1529 = vpack.c.b16 %v1368, %v1361
    %v1530 = vpack.c.b16 %v1369, %v1362
    %v1531 = vpack.c.b16 %v1370, %v1363
    %v1532 = vpack.c.b16 %v1378, %v1371
    %v1533 = vpack.c.b16 %v1379, %v1372
    %v1534 = vpack.c.b16 %v1380, %v1373
    %v1535 = vpack.c.b16 %v1381, %v1374
    %v1536 = vpack.c.b16 %v1382, %v1375
    %v1537 = vpack.c.b16 %v1383, %v1376
    %v1538 = vpack.c.b16 %v1384, %v1377
    %v1539 = vpack.c.b16 %v1392, %v1385
    %v1540 = vpack.c.b16 %v1393, %v1386
    %v1541 = vpack.c.b16 %v1394, %v1387
    %v1542 = vpack.c.b16 %v1395, %v1388
    %v1543 = vpack.c.b16 %v1396, %v1389
    %v1544 = vpack.c.b16 %v1397, %v1390
    %v1545 = vpack.c.b16 %v1398, %v1391
    %v1546 = vpack.c.b16 %v1406, %v1399
    %v1547 = vpack.c.b16 %v1407, %v1400
    %v1548 = vpack.c.b16 %v1408, %v1401
    %v1549 = vpack.c.b16 %v1409, %v1402
    %v1550 = vpack.c.b16 %v1410, %v1403
    %v1551 = vpack.c.b16 %v1411, %v1404
    %v1552 = vpack.c.b16 %v1412, %v1405
    %v1553 = vpack.c.b16 %v1420, %v1413
    %v1554 = vpack.c.b16 %v1421, %v1414
    %v1555 = vpack.c.b16 %v1422, %v1415
    %v1556 = vpack.c.b16 %v1423, %v1416
    %v1557 = vpack.c.b16 %v1424, %v1417
    %v1558 = vpack.c.b16 %v1425, %v1418
    %v1559 = vpack.c.b16 %v1426, %v1419
    %v1560 = vpack.c.b16 %v1434, %v1427
    %v1561 = vpack.c.b16 %v1435, %v1428
    %v1562 = vpack.c.b16 %v1436, %v1429
    %v1563 = vpack.c.b16 %v1437, %v1430
    %v1564 = vpack.c.b16 %v1438, %v1431
    %v1565 = vpack.c.b16 %v1439, %v1432
    %v1566 = vpack.c.b16 %v1440, %v1433
    %v1567 = vpack.c.b16 %v1448, %v1441
    %v1568 = vpack.c.b16 %v1449, %v1442
    %v1569 = vpack.c.b16 %v1450, %v1443
    %v1570 = vpack.c.b16 %v1451, %v1444
    %v1571 = vpack.c.b16 %v1452, %v1445
    %v1572 = vpack.c.b16 %v1453, %v1446
    %v1573 = vpack.c.b16 %v1454, %v1447
    %v1574 = vpack.c.b16 %v1462, %v1455
    %v1575 = vpack.c.b16 %v1463, %v1456
    %v1576 = vpack.c.b16 %v1464, %v1457
    %v1577 = vpack.c.b16 %v1465, %v1458
    %v1578 = vpack.c.b16 %v1466, %v1459
    %v1579 = vpack.c.b16 %v1467, %v1460
    %v1580 = vpack.c.b16 %v1468, %v1461
    %1693 = vmatprep.subr.bf16.mxu0 %v1470
    %1694 = vmatpush1.bf16.msra.mxu0 %v1469
    %1695 = vmatprep.subr.bf16.mxu0 %v1477
    %1696 = vmatpush1.bf16.msra.mxu0 %v1476
    %1697 = vmatprep.subr.bf16.mxu0 %v1484
    %1698 = vmatpush1.bf16.msra.mxu0 %v1483
    %1699 = vmatprep.subr.bf16.mxu0 %v1491
    %1700 = vmatpush1.bf16.msra.mxu0 %v1490
    %1701 = vmatprep.subr.bf16.mxu0 %v1498
    %1702 = vmatpush1.bf16.msra.mxu0 %v1497
    %1703 = vmatprep.subr.bf16.mxu0 %v1505
    %1704 = vmatpush1.bf16.msra.mxu0 %v1504
    %1705 = vmatprep.subr.bf16.mxu0 %v1512
    %1706 = vmatpush1.bf16.msra.mxu0 %v1511
    %1707 = vmatprep.subr.bf16.mxu0 %v1519
    %1708 = vmatpush1.bf16.msra.mxu0 %v1518
    %1709 = vmatprep.subr.bf16.mxu0 %v1526
    %1710 = vmatpush1.bf16.msra.mxu0 %v1525
    %1711 = vmatprep.subr.bf16.mxu0 %v1533
    %1712 = vmatpush1.bf16.msra.mxu0 %v1532
    %1713 = vmatprep.subr.bf16.mxu0 %v1540
    %1714 = vmatpush1.bf16.msra.mxu0 %v1539
    %1715 = vmatprep.subr.bf16.mxu0 %v1547
    %1716 = vmatpush1.bf16.msra.mxu0 %v1546
    %1717 = vmatprep.subr.bf16.mxu0 %v1554
    %1718 = vmatpush1.bf16.msra.mxu0 %v1553
    %1719 = vmatprep.subr.bf16.mxu0 %v1561
    %1720 = vmatpush1.bf16.msra.mxu0 %v1560
    %1721 = vmatprep.subr.bf16.mxu0 %v1568
    %1722 = vmatpush1.bf16.msra.mxu0 %v1567
    %1723 = vmatprep.subr.bf16.mxu0 %v1575
    %1724 = vmatpush1.bf16.msra.mxu0 %v1574
    %1725 = vmatprep.mubr.bf16.mxu0 %v948
    %1726 = vmatmul.mubr.bf16.gmra.mrb[0].mxu0 %v947
    %v1727 = vpop.f32.mrb[0].mxu0
    %v1728 = vadd.f32 %v1085, %v1727
    %v1729 = vpop.f32.mrb[0].mxu0
    %v1730 = vadd.f32 %v1089, %v1729
    %v1731 = vpop.f32.mrb[0].mxu0
    %v1732 = vpop.f32.mrb[0].mxu0
    %1733 = vdwg.mxu0
    %1734 = vmatprep.subr.bf16.mxu0 %v1472
    %1735 = vmatpush1.bf16.msra.mxu0 %v1471
    %1736 = vmatprep.subr.bf16.mxu0 %v1479
    %1737 = vmatpush1.bf16.msra.mxu0 %v1478
    %1738 = vmatprep.subr.bf16.mxu0 %v1486
    %1739 = vmatpush1.bf16.msra.mxu0 %v1485
    %1740 = vmatprep.subr.bf16.mxu0 %v1493
    %1741 = vmatpush1.bf16.msra.mxu0 %v1492
    %1742 = vmatprep.subr.bf16.mxu0 %v1500
    %1743 = vmatpush1.bf16.msra.mxu0 %v1499
    %1744 = vmatprep.subr.bf16.mxu0 %v1507
    %1745 = vmatpush1.bf16.msra.mxu0 %v1506
    %1746 = vmatprep.subr.bf16.mxu0 %v1514
    %1747 = vmatpush1.bf16.msra.mxu0 %v1513
    %1748 = vmatprep.subr.bf16.mxu0 %v1521
    %1749 = vmatpush1.bf16.msra.mxu0 %v1520
    %1750 = vmatprep.subr.bf16.mxu0 %v1528
    %1751 = vmatpush1.bf16.msra.mxu0 %v1527
    %1752 = vmatprep.subr.bf16.mxu0 %v1535
    %1753 = vmatpush1.bf16.msra.mxu0 %v1534
    %1754 = vmatprep.subr.bf16.mxu0 %v1542
    %1755 = vmatpush1.bf16.msra.mxu0 %v1541
    %1756 = vmatprep.subr.bf16.mxu0 %v1549
    %1757 = vmatpush1.bf16.msra.mxu0 %v1548
    %1758 = vmatprep.subr.bf16.mxu0 %v1556
    %1759 = vmatpush1.bf16.msra.mxu0 %v1555
    %1760 = vmatprep.subr.bf16.mxu0 %v1563
    %1761 = vmatpush1.bf16.msra.mxu0 %v1562
    %1762 = vmatprep.subr.bf16.mxu0 %v1570
    %1763 = vmatpush1.bf16.msra.mxu0 %v1569
    %1764 = vmatprep.subr.bf16.mxu0 %v1577
    %1765 = vmatpush1.bf16.msra.mxu0 %v1576
    %1766 = vmatprep.mubr.bf16.mxu0 %v948
    %1767 = vmatmul.mubr.bf16.gmra.mrb[0].mxu0 %v947
    %v1768 = vpop.f32.mrb[0].mxu0
    %v1769 = vadd.f32 %v1093, %v1768
    %v1770 = vpop.f32.mrb[0].mxu0
    %v1771 = vadd.f32 %v1097, %v1770
    %v1772 = vpop.f32.mrb[0].mxu0
    %v1773 = vpop.f32.mrb[0].mxu0
    %1774 = vdwg.mxu0
    %1775 = vmatprep.subr.bf16.mxu0 %v1474
    %1776 = vmatpush1.bf16.msra.mxu0 %v1473
    %1777 = vmatprep.subr.bf16.mxu0 %v1481
    %1778 = vmatpush1.bf16.msra.mxu0 %v1480
    %1779 = vmatprep.subr.bf16.mxu0 %v1488
    %1780 = vmatpush1.bf16.msra.mxu0 %v1487
    %1781 = vmatprep.subr.bf16.mxu0 %v1495
    %1782 = vmatpush1.bf16.msra.mxu0 %v1494
    %1783 = vmatprep.subr.bf16.mxu0 %v1502
    %1784 = vmatpush1.bf16.msra.mxu0 %v1501
    %1785 = vmatprep.subr.bf16.mxu0 %v1509
    %1786 = vmatpush1.bf16.msra.mxu0 %v1508
    %1787 = vmatprep.subr.bf16.mxu0 %v1516
    %1788 = vmatpush1.bf16.msra.mxu0 %v1515
    %1789 = vmatprep.subr.bf16.mxu0 %v1523
    %1790 = vmatpush1.bf16.msra.mxu0 %v1522
    %1791 = vmatprep.subr.bf16.mxu0 %v1530
    %1792 = vmatpush1.bf16.msra.mxu0 %v1529
    %1793 = vmatprep.subr.bf16.mxu0 %v1537
    %1794 = vmatpush1.bf16.msra.mxu0 %v1536
    %1795 = vmatprep.subr.bf16.mxu0 %v1544
    %1796 = vmatpush1.bf16.msra.mxu0 %v1543
    %1797 = vmatprep.subr.bf16.mxu0 %v1551
    %1798 = vmatpush1.bf16.msra.mxu0 %v1550
    %1799 = vmatprep.subr.bf16.mxu0 %v1558
    %1800 = vmatpush1.bf16.msra.mxu0 %v1557
    %1801 = vmatprep.subr.bf16.mxu0 %v1565
    %1802 = vmatpush1.bf16.msra.mxu0 %v1564
    %1803 = vmatprep.subr.bf16.mxu0 %v1572
    %1804 = vmatpush1.bf16.msra.mxu0 %v1571
    %1805 = vmatprep.subr.bf16.mxu0 %v1579
    %1806 = vmatpush1.bf16.msra.mxu0 %v1578
    %1807 = vmatprep.mubr.bf16.mxu0 %v948
    %1808 = vmatmul.mubr.bf16.gmra.mrb[0].mxu0 %v947
    %v1809 = vpop.f32.mrb[0].mxu0
    %v1810 = vadd.f32 %v1101, %v1809
    %v1811 = vpop.f32.mrb[0].mxu0
    %v1812 = vadd.f32 %v1105, %v1811
    %v1813 = vpop.f32.mrb[0].mxu0
    %v1814 = vpop.f32.mrb[0].mxu0
    %1815 = vdwg.mxu0
    %1816 = vmatprep.subr.bf16.mxu0 0
    %1817 = vmatpush1.bf16.msra.mxu0 %v1475
    %1818 = vmatprep.subr.bf16.mxu0 0
    %1819 = vmatpush1.bf16.msra.mxu0 %v1482
    %1820 = vmatprep.subr.bf16.mxu0 0
    %1821 = vmatpush1.bf16.msra.mxu0 %v1489
    %1822 = vmatprep.subr.bf16.mxu0 0
    %1823 = vmatpush1.bf16.msra.mxu0 %v1496
    %1824 = vmatprep.subr.bf16.mxu0 0
    %1825 = vmatpush1.bf16.msra.mxu0 %v1503
    %1826 = vmatprep.subr.bf16.mxu0 0
    %1827 = vmatpush1.bf16.msra.mxu0 %v1510
    %1828 = vmatprep.subr.bf16.mxu0 0
    %1829 = vmatpush1.bf16.msra.mxu0 %v1517
    %1830 = vmatprep.subr.bf16.mxu0 0
    %1831 = vmatpush1.bf16.msra.mxu0 %v1524
    %1832 = vmatprep.subr.bf16.mxu0 0
    %1833 = vmatpush1.bf16.msra.mxu0 %v1531
    %1834 = vmatprep.subr.bf16.mxu0 0
    %1835 = vmatpush1.bf16.msra.mxu0 %v1538
    %1836 = vmatprep.subr.bf16.mxu0 0
    %1837 = vmatpush1.bf16.msra.mxu0 %v1545
    %1838 = vmatprep.subr.bf16.mxu0 0
    %1839 = vmatpush1.bf16.msra.mxu0 %v1552
    %1840 = vmatprep.subr.bf16.mxu0 0
    %1841 = vmatpush1.bf16.msra.mxu0 %v1559
    %1842 = vmatprep.subr.bf16.mxu0 0
    %1843 = vmatpush1.bf16.msra.mxu0 %v1566
    %1844 = vmatprep.subr.bf16.mxu0 0
    %1845 = vmatpush1.bf16.msra.mxu0 %v1573
    %1846 = vmatprep.subr.bf16.mxu0 0
    %1847 = vmatpush1.bf16.msra.mxu0 %v1580
    %1848 = vmatprep.mubr.bf16.mxu0 %v948
    %1849 = vmatmul.mubr.bf16.gmra.mrb[0].mxu0 %v947
    %v1850 = vpop.f32.mrb[0].mxu0
    %v1851 = vadd.f32 %v1109, %v1850
    %v1852 = vpop.f32.mrb[0].mxu0
    %v1853 = vpop.f32.mrb[0].mxu0
    %v1854 = vpop.f32.mrb[0].mxu0
    %1855 = vdwg.mxu0
    %s1856 = scalar_lea.vmem [#allocation10], 7
    %v1857 = vld [vmem:[%s1856] ss:$8 sm:$0xf]
    %v1858 = vld [vmem:[%s1856] ss:$8 sm:$0xf0]
    %v1859 = vor.u32 %v1857, %v1858
    %v1861 = vlaneseq
    %v1862 = vshrl.u32 %v1861, 7
    %v1863 = vsub.s32 0, %v1862
    %v1864 = vrot.slane %v1859, %v1863
    %v1865 = vlaneseq
    %v1866 = vshrl.u32 %v1865, 7
    %v1867 = vsub.s32 1, %v1866
    %v1868 = vrot.slane %v1859, %v1867
    %v1869 = vlaneseq
    %v1870 = vshrl.u32 %v1869, 7
    %v1871 = vsub.s32 2, %v1870
    %v1872 = vrot.slane %v1859, %v1871
    %v1873 = vlaneseq
    %v1874 = vshrl.u32 %v1873, 7
    %v1875 = vsub.s32 3, %v1874
    %v1876 = vrot.slane %v1859, %v1875
    %v1877 = vlaneseq
    %v1878 = vshrl.u32 %v1877, 7
    %v1879 = vsub.s32 4, %v1878
    %v1880 = vrot.slane %v1859, %v1879
    %v1881 = vlaneseq
    %v1882 = vshrl.u32 %v1881, 7
    %v1883 = vsub.s32 5, %v1882
    %v1884 = vrot.slane %v1859, %v1883
    %v1885 = vlaneseq
    %v1886 = vshrl.u32 %v1885, 7
    %v1887 = vsub.s32 6, %v1886
    %v1888 = vrot.slane %v1859, %v1887
    %v1896 = vmul.f32 %v1864, %v1728
    %v1897 = vmul.f32 %v1868, %v1730
    %v1898 = vmul.f32 %v1872, %v1769
    %v1899 = vmul.f32 %v1876, %v1771
    %v1900 = vmul.f32 %v1880, %v1810
    %v1901 = vmul.f32 %v1884, %v1812
    %v1902 = vmul.f32 %v1888, %v1851
    %v1903 = vtanh.pop %v1896
    %v1904 = vtanh.pop %v1897
    %v1905 = vtanh.pop %v1898
    %v1906 = vtanh.pop %v1899
    %v1907 = vtanh.pop %v1900
    %v1908 = vtanh.pop %v1901
    %v1909 = vtanh.pop %v1902
    %v1910 = vmul.f32 %v1903, 0.5
    %v1911 = vmul.f32 %v1904, 0.5
    %v1912 = vmul.f32 %v1905, 0.5
    %v1913 = vmul.f32 %v1906, 0.5
    %v1914 = vmul.f32 %v1907, 0.5
    %v1915 = vmul.f32 %v1908, 0.5
    %v1916 = vmul.f32 %v1909, 0.5
    %v1917 = vadd.f32 %v1910, 0.5
    %v1918 = vadd.f32 %v1911, 0.5
    %v1919 = vadd.f32 %v1912, 0.5
    %v1920 = vadd.f32 %v1913, 0.5
    %v1921 = vadd.f32 %v1914, 0.5
    %v1922 = vadd.f32 %v1915, 0.5
    %v1923 = vadd.f32 %v1916, 0.5
    %v1924 = vmul.f32 %v1728, %v1917
    %v1925 = vmul.f32 %v1730, %v1918
    %v1926 = vmul.f32 %v1769, %v1919
    %v1927 = vmul.f32 %v1771, %v1920
    %v1928 = vmul.f32 %v1810, %v1921
    %v1929 = vmul.f32 %v1812, %v1922
    %v1930 = vmul.f32 %v1851, %v1923
    %1931 = vst [vmem:[#allocation11] sm:$0xff] %v1924
    %1932 = vst [vmem:[#allocation11 + $0x8] sm:$0xff] %v1925
    %1933 = vst [vmem:[#allocation11 + $0x10] sm:$0xff] %v1926
    %1934 = vst [vmem:[#allocation11 + $0x18] sm:$0xff] %v1927
    %1935 = vst [vmem:[#allocation11 + $0x20] sm:$0xff] %v1928
    %1936 = vst [vmem:[#allocation11 + $0x28] sm:$0xff] %v1929
    %1937 = vst [vmem:[#allocation11 + $0x30] sm:$0xff] %v1930
    // Predicated region
    $region42: #{tpu_custom_call.1} parent=1 // pred_check
      _
    $region43: #{tpu_custom_call.1} parent=1 // pred_check_branch
      %1939 = sbr.rel (0) target = $region45
    $region44: #{tpu_custom_call.1} parent=1 // pred_region
      %s1941 = ssub.s32 896, 896
      %1942 = vsyncadd [#allocation4], %s1941
      %s1944 = sshll.u32 [#allocation11], 4
      %s1945 = int_to_ptr.vmem [resolvable:$true] %s1944
      %1947 = dma.vmem_to_hbm [thread:$0]  %s1945, 896, %s5, [#allocation4]
    $region45: #{tpu_custom_call.1} parent=1 // pred_fallthru
      _
    // Predicated region
    $region46: #{tpu_custom_call.1} parent=1 // pred_check
      _
    $region47: #{tpu_custom_call.1} parent=1 // pred_check_branch
      %1949 = sbr.rel (0) target = $region49
    $region48: #{tpu_custom_call.1} parent=1 // pred_region
      %1950 = dma.done [#allocation4], 896
    $region49: #{tpu_custom_call.1} parent=1 // pred_fallthru
      _
    %1951 = vsyncpa [#allocation3], 1
    %1952 = vsyncpa [#allocation6], 1
    %1953 = vsyncpa [#allocation9], 1
    %1954 = vsyncpa [#allocation4], 1

</llo_original>
